<compile_context>
chip_gen: v5e
topology: v5e:2x2
jax: 0.10.0
libtpu: 0.0.40
codegen_flags: <defaults>
</compile_context>

<pallas_src>
import jax
import jax.numpy as jnp
from jax.experimental import pallas as pl
from jax.experimental.pallas import tpu as pltpu

# ---------------------------------------------------------------------------
# Config (small shapes consistent with the module)
# ---------------------------------------------------------------------------
nat_labels = ["a", "b", "c", "d", "e"]       # len(nat_labels) = 5
INPUT_SIZE = 20                              # vocab size
OUTPUT_SIZE = 10                             # unused by forward (mirrors module)
EMBEDDING_DIM = 32
HIDDEN_DIM = 32
NUM_LAYERS = 2
N_CATS = 8
N_LABELS = len(nat_labels)
BATCH = 2
SEQ = 8

H = HIDDEN_DIM
G3 = 3 * H                                   # 96: packed [r|z|n] gate width
VP = 32                                      # vocab padded to an aligned K dim

# --- GRU slab row layout (width G3 = 96) -----------------------------------
_G_TABLE1 = 0                                # (VP, 96)  emb_pad @ wih1_packed
_G_WHH1 = _G_TABLE1 + VP                     # (H,  96)
_G_WIH2 = _G_WHH1 + H                        # (H,  96)
_G_WHH2 = _G_WIH2 + H                        # (H,  96)
_G_BIAS = _G_WHH2 + H                        # (8,  96)  rows: bi1,bhh1n,bi2,bhh2n,0...
_G_ROWS = _G_BIAS + 8                        # 136

# --- Head slab row layout (width H = 32) ------------------------------------
_H_BLOCK = 32 + 32 + 64 + 8                  # bfcw_pad, cats_pad, w2, bias-block
_H_FCW = 2 * _H_BLOCK                        # (32, 32) final fc weight (cols>=NL zero)
_H_FCB = _H_FCW + 32                         # (8, 32)  row 0 = fcb_pad
_H_ROWS = _H_FCB + 8                         # 312


# ---------------------------------------------------------------------------
# Fused kernel
# ---------------------------------------------------------------------------
def _grucat_kernel(tok_ref,        # (T*BP, 1) int32, row index = t*BP + b
                   gslab_ref,      # (136, 96) f32  packed GRU params
                   hslab_ref,      # (312, 32) f32  packed head params
                   o_ref,          # (BP, 32)  f32  (cols >= N_LABELS are zero)
                   h1buf_ref):     # (T*BP, H) f32  scratch: layer-1 hidden states
    f32 = jnp.float32
    BP = o_ref.shape[0]
    TB = tok_ref.shape[0]
    T = TB // BP

    # ---- carve the GRU slab (static slices of a VMEM ref: free) ----
    table1 = gslab_ref[_G_TABLE1:_G_TABLE1 + VP, :]     # (VP, 96)
    whh1 = gslab_ref[_G_WHH1:_G_WHH1 + H, :]            # (H, 96)
    wih2 = gslab_ref[_G_WIH2:_G_WIH2 + H, :]            # (H, 96)
    whh2 = gslab_ref[_G_WHH2:_G_WHH2 + H, :]            # (H, 96)
    gbias = gslab_ref[_G_BIAS:_G_BIAS + 8, :]           # (8, 96)
    bi1 = gbias[0:1, :]
    bhh1n = jnp.broadcast_to(gbias[1:2, :], (BP, G3))   # hoisted broadcast
    bi2 = gbias[2:3, :]
    bhh2n = jnp.broadcast_to(gbias[3:4, :], (BP, G3))

    # ---- embedding gather + layer-1 input projections: ONE matmul ----
    tok = tok_ref[...]                                   # (TB, 1) int32
    onehot = (jax.lax.broadcasted_iota(jnp.int32, (TB, VP), 1) == tok).astype(f32)
    gi1 = jnp.dot(onehot, table1, preferred_element_type=f32) + bi1   # (TB, 96)

    def gru_cell(gi, h, whh, bhhn):
        # PyTorch GRU gate math with packed [r|z|n] weights: one MXU matmul,
        # one sigmoid over the 64-lane r|z slab, one tanh on the n slab.
        gh = jnp.dot(h, whh, preferred_element_type=f32) + bhhn       # (BP, 96)
        rz = jax.nn.sigmoid(gi[:, :2 * H] + gh[:, :2 * H])
        r = rz[:, :H]
        z = rz[:, H:2 * H]
        n = jnp.tanh(gi[:, 2 * H:] + r * gh[:, 2 * H:])
        return (1.0 - z) * n + z * h

    # ---- pass 1: layer-1 recurrence (fully unrolled), stash hidden states ----
    h1 = jnp.zeros((BP, H), f32)
    for t in range(T):
        h1 = gru_cell(gi1[t * BP:(t + 1) * BP, :], h1, whh1, bhh1n)
        h1buf_ref[t * BP:(t + 1) * BP, :] = h1

    # ---- layer-2 input projections: one batched matmul off the serial chain ----
    gi2 = jnp.dot(h1buf_ref[...], wih2, preferred_element_type=f32) + bi2  # (TB, 96)

    # ---- pass 2: layer-2 recurrence ----
    h2 = jnp.zeros((BP, H), f32)
    for t in range(T):
        h2 = gru_cell(gi2[t * BP:(t + 1) * BP, :], h2, whh2, bhh2n)

    # ---- head: B(a1) -> B(a2) -> final Linear ----
    x = h2
    for k in range(2):
        base = k * _H_BLOCK
        bfcw = hslab_ref[base:base + 32, :]              # (32, 32) cols >= C zero
        cats = hslab_ref[base + 32:base + 64, :]         # (32, 32) rows >= C zero
        w2 = hslab_ref[base + 64:base + 128, :]          # (64, 32)
        hb = hslab_ref[base + 128:base + 136, :]         # (8, 32)
        bfcb = hb[0:1, :]                                # cols >= C are -1e30
        b2 = hb[1:2, :]

        logits = jnp.dot(x, bfcw, preferred_element_type=f32) + bfcb  # (BP, 32)
        logits = logits - jnp.max(logits, axis=-1, keepdims=True)
        e = jnp.exp(logits)                              # padded cols underflow to 0
        p = e / jnp.sum(e, axis=-1, keepdims=True)       # exact softmax
        v = jnp.dot(p, cats, preferred_element_type=f32)               # (BP, H)
        xv = jnp.concatenate([x, v], axis=-1)            # (BP, 2H): one lane shift
        x = jnp.dot(xv, w2, preferred_element_type=f32) + b2           # (BP, H)

    fcw = hslab_ref[_H_FCW:_H_FCW + 32, :]               # (32, 32) cols >= NL zero
    fcbb = hslab_ref[_H_FCB:_H_FCB + 8, :]
    fcb = fcbb[0:1, :]
    out = jnp.dot(x, fcw, preferred_element_type=f32) + fcb            # (BP, 32)
    o_ref[...] = out.astype(o_ref.dtype)


def grucat_forward(params, x_tokens):
    """Fused forward pass.  x_tokens: (B, T) int32 token ids (lengths=None path)."""
    B, T = x_tokens.shape
    BP = max(8, ((B + 7) // 8) * 8)               # sublane-dense batch padding
    tok_tb = jnp.transpose(x_tokens, (1, 0))      # (T, B) time-major
    tok_tb = jnp.pad(tok_tb, ((0, 0), (0, BP - B)))
    tok_flat = tok_tb.reshape(T * BP, 1).astype(jnp.int32)

    vmem = pl.BlockSpec(memory_space=pltpu.MemorySpace.VMEM)
    out = pl.pallas_call(
        _grucat_kernel,
        out_shape=jax.ShapeDtypeStruct((BP, H), jnp.float32),
        in_specs=[vmem, vmem, vmem],
        out_specs=vmem,
        scratch_shapes=[pltpu.VMEM((T * BP, H), jnp.float32)],
    )(tok_flat, params["gru_slab"], params["head_slab"])
    return out[:B, :N_LABELS]
    # TODO(synk): the optional `lengths`-based last-valid-step gather of the
    # original module is not implemented (forward here matches lengths=None).


# ---------------------------------------------------------------------------
# Parameter construction (raw PyTorch-layout) + kernel-layout packing
# ---------------------------------------------------------------------------
def init_raw_params(key):
    ks = iter(jax.random.split(key, 64))
    p = {}
    p["embedding"] = jax.random.normal(next(ks), (INPUT_SIZE, EMBEDDING_DIM),
                                       jnp.float32) * 0.1
    p["gru"] = []
    for layer in range(NUM_LAYERS):
        in_dim = EMBEDDING_DIM if layer == 0 else HIDDEN_DIM
        scale = 1.0 / jnp.sqrt(HIDDEN_DIM)
        p["gru"].append({
            "w_ih": jax.random.uniform(next(ks), (3 * HIDDEN_DIM, in_dim),
                                       jnp.float32, -scale, scale),
            "w_hh": jax.random.uniform(next(ks), (3 * HIDDEN_DIM, HIDDEN_DIM),
                                       jnp.float32, -scale, scale),
            "b_ih": jax.random.uniform(next(ks), (3 * HIDDEN_DIM,), jnp.float32,
                                       -scale, scale),
            "b_hh": jax.random.uniform(next(ks), (3 * HIDDEN_DIM,), jnp.float32,
                                       -scale, scale),
        })

    def init_b(k):
        kk = iter(jax.random.split(k, 8))
        s1 = 1.0 / jnp.sqrt(HIDDEN_DIM)
        s2 = 1.0 / jnp.sqrt(2 * HIDDEN_DIM)
        return {
            "fc_w": jax.random.uniform(next(kk), (N_CATS, HIDDEN_DIM),
                                       jnp.float32, -s1, s1),
            "fc_b": jax.random.uniform(next(kk), (N_CATS,), jnp.float32, -s1, s1),
            "cats": jax.random.normal(next(kk), (N_CATS, HIDDEN_DIM),
                                      jnp.float32) * 0.02,
            "fc2_w": jax.random.uniform(next(kk), (HIDDEN_DIM, 2 * HIDDEN_DIM),
                                        jnp.float32, -s2, s2),
            "fc2_b": jax.random.uniform(next(kk), (HIDDEN_DIM,), jnp.float32,
                                        -s2, s2),
        }

    p["a1"] = init_b(next(ks))
    p["a2"] = init_b(next(ks))
    s = 1.0 / jnp.sqrt(HIDDEN_DIM)
    p["fc_w"] = jax.random.uniform(next(ks), (N_LABELS, HIDDEN_DIM),
                                   jnp.float32, -s, s)
    p["fc_b"] = jax.random.uniform(next(ks), (N_LABELS,), jnp.float32, -s, s)
    return p


def prepare_params(raw):
    """Pack all 18 tensors into two lane-dense f32 slabs for the fused kernel."""

    def pack_gates_T(w):                       # (3H, in) -> (in, 3H) cols [r|z|n]
        return jnp.concatenate([w[0:H].T, w[H:2 * H].T, w[2 * H:3 * H].T], axis=1)

    g1, g2 = raw["gru"][0], raw["gru"][1]

    # Embedding folded into layer-1 input projections (pads V=20 -> 32).
    emb_pad = jnp.pad(raw["embedding"], ((0, VP - INPUT_SIZE), (0, 0)))   # (VP, E)
    table1 = emb_pad @ pack_gates_T(g1["w_ih"])                          # (VP, 96)

    def gate_bias(b_ih, b_hh):
        bi = jnp.concatenate([b_ih[0:H] + b_hh[0:H],
                              b_ih[H:2 * H] + b_hh[H:2 * H],
                              b_ih[2 * H:]]).reshape(1, G3)
        bhhn = jnp.concatenate([jnp.zeros((2 * H,), jnp.float32),
                                b_hh[2 * H:]]).reshape(1, G3)
        return bi, bhhn

    bi1, bhh1n = gate_bias(g1["b_ih"], g1["b_hh"])
    bi2, bhh2n = gate_bias(g2["b_ih"], g2["b_hh"])
    gbias = jnp.concatenate([bi1, bhh1n, bi2, bhh2n,
                             jnp.zeros((4, G3), jnp.float32)], axis=0)   # (8, 96)
    gru_slab = jnp.concatenate([table1,
                                pack_gates_T(g1["w_hh"]),
                                pack_gates_T(g2["w_ih"]),
                                pack_gates_T(g2["w_hh"]),
                                gbias], axis=0)                          # (136, 96)

    def head_block(bp):
        bfcw = jnp.pad(bp["fc_w"].T, ((0, 0), (0, H - N_CATS)))          # (32, 32)
        cats = jnp.pad(bp["cats"], ((0, H - N_CATS), (0, 0)))            # (32, 32)
        w2 = bp["fc2_w"].T                                               # (64, 32)
        # Padded softmax columns get a -1e30 bias -> exp underflows to exactly 0.
        bfcb = jnp.concatenate(
            [bp["fc_b"], jnp.full((H - N_CATS,), -1e30, jnp.float32)]).reshape(1, H)
        b2 = bp["fc2_b"].reshape(1, H)
        hb = jnp.concatenate([bfcb, b2, jnp.zeros((6, H), jnp.float32)], axis=0)
        return jnp.concatenate([bfcw, cats, w2, hb], axis=0)             # (136, 32)

    fcw = jnp.pad(raw["fc_w"].T, ((0, 0), (0, H - N_LABELS)))            # (32, 32)
    fcb = jnp.pad(raw["fc_b"].reshape(1, -1), ((0, 0), (0, H - N_LABELS)))
    fcbb = jnp.concatenate([fcb, jnp.zeros((7, H), jnp.float32)], axis=0)
    head_slab = jnp.concatenate([head_block(raw["a1"]), head_block(raw["a2"]),
                                 fcw, fcbb], axis=0)                     # (312, 32)

    assert gru_slab.shape == (_G_ROWS, G3), gru_slab.shape
    assert head_slab.shape == (_H_ROWS, H), head_slab.shape
    return {"gru_slab": gru_slab, "head_slab": head_slab}


# ---------------------------------------------------------------------------
# Pure-JAX reference (PyTorch-layout params)
# ---------------------------------------------------------------------------
def grucat_reference(raw, x_tokens):
    emb = jnp.take(raw["embedding"], x_tokens, axis=0)     # (B, T, E)
    B, T, _ = emb.shape
    seq = emb
    for lp in raw["gru"]:
        h = jnp.zeros((B, H), jnp.float32)
        outs = []
        for t in range(T):
            x_t = seq[:, t, :]
            gi = x_t @ lp["w_ih"].T + lp["b_ih"]
            gh = h @ lp["w_hh"].T + lp["b_hh"]
            r = jax.nn.sigmoid(gi[:, :H] + gh[:, :H])
            z = jax.nn.sigmoid(gi[:, H:2 * H] + gh[:, H:2 * H])
            n = jnp.tanh(gi[:, 2 * H:] + r * gh[:, 2 * H:])
            h = (1.0 - z) * n + z * h
            outs.append(h)
        seq = jnp.stack(outs, axis=1)
    x = seq[:, -1, :]

    def b_block(x, bp):
        p = jax.nn.softmax(x @ bp["fc_w"].T + bp["fc_b"], axis=-1)
        v = p @ bp["cats"]
        return jnp.concatenate([x, v], axis=-1) @ bp["fc2_w"].T + bp["fc2_b"]

    x = b_block(x, raw["a1"])
    x = b_block(x, raw["a2"])
    return x @ raw["fc_w"].T + raw["fc_b"]


if __name__ == "__main__":
    key = jax.random.PRNGKey(0)
    k_params, k_x = jax.random.split(key)
    raw = init_raw_params(k_params)
    params = prepare_params(raw)
    x_tokens = jax.random.randint(k_x, (BATCH, SEQ), 0, INPUT_SIZE, dtype=jnp.int32)

    fwd = jax.jit(grucat_forward)
    out = jax.block_until_ready(fwd(params, x_tokens))

    ref = grucat_reference(raw, x_tokens)
    assert out.shape == (BATCH, N_LABELS), out.shape
    assert jnp.allclose(out, ref, atol=1e-4, rtol=1e-4), "mismatch vs reference"

    print("KERNEL_OK")
</pallas_src>

<mosaic_0001>
module attributes {stable_mosaic.version = 11 : i64} {
  func.func @_grucat_kernel(%arg0: memref<64x1xi32, #tpu.memory_space<vmem>>, %arg1: memref<136x96xf32, #tpu.memory_space<vmem>>, %arg2: memref<312x32xf32, #tpu.memory_space<vmem>>, %arg3: memref<8x32xf32, #tpu.memory_space<vmem>>, %arg4: memref<64x32xf32, #tpu.memory_space<vmem>>) attributes {dimension_semantics = [], scalar_prefetch = 0 : i64, scratch_operands = 1 : i64, tpu.core_type = #tpu.core_type<tc>} {
    %c0 = arith.constant 0 : index
    %c0_0 = arith.constant 0 : index
    %0 = vector.load %arg1[%c0, %c0_0] : memref<136x96xf32, #tpu.memory_space<vmem>>, vector<32x96xf32>
    %c32 = arith.constant 32 : index
    %c0_1 = arith.constant 0 : index
    %1 = vector.load %arg1[%c32, %c0_1] : memref<136x96xf32, #tpu.memory_space<vmem>>, vector<32x96xf32>
    %c64 = arith.constant 64 : index
    %c0_2 = arith.constant 0 : index
    %2 = vector.load %arg1[%c64, %c0_2] : memref<136x96xf32, #tpu.memory_space<vmem>>, vector<32x96xf32>
    %c96 = arith.constant 96 : index
    %c0_3 = arith.constant 0 : index
    %3 = vector.load %arg1[%c96, %c0_3] : memref<136x96xf32, #tpu.memory_space<vmem>>, vector<32x96xf32>
    %c128 = arith.constant 128 : index
    %c0_4 = arith.constant 0 : index
    %4 = vector.load %arg1[%c128, %c0_4] : memref<136x96xf32, #tpu.memory_space<vmem>>, vector<8x96xf32>
    %5 = vector.extract_strided_slice %4 {offsets = [0, 0], sizes = [1, 96], strides = [1, 1]} : vector<8x96xf32> to vector<1x96xf32>
    %6 = vector.extract_strided_slice %4 {offsets = [1, 0], sizes = [1, 96], strides = [1, 1]} : vector<8x96xf32> to vector<1x96xf32>
    %7 = vector.shape_cast %6 : vector<1x96xf32> to vector<1x96xf32>
    %8 = vector.broadcast %7 : vector<1x96xf32> to vector<8x96xf32>
    %9 = vector.extract_strided_slice %4 {offsets = [2, 0], sizes = [1, 96], strides = [1, 1]} : vector<8x96xf32> to vector<1x96xf32>
    %10 = vector.extract_strided_slice %4 {offsets = [3, 0], sizes = [1, 96], strides = [1, 1]} : vector<8x96xf32> to vector<1x96xf32>
    %11 = vector.shape_cast %10 : vector<1x96xf32> to vector<1x96xf32>
    %12 = vector.broadcast %11 : vector<1x96xf32> to vector<8x96xf32>
    %c0_5 = arith.constant 0 : index
    %c0_6 = arith.constant 0 : index
    %13 = vector.load %arg0[%c0_5, %c0_6] : memref<64x1xi32, #tpu.memory_space<vmem>>, vector<64x1xi32>
    %14 = tpu.iota {dimensions = array<i32: 1>} : vector<64x32xi32>
    %15 = vector.broadcast %13 : vector<64x1xi32> to vector<64x32xi32>
    %16 = arith.cmpi eq, %14, %15 : vector<64x32xi32>
    %17 = arith.extui %16 : vector<64x32xi1> to vector<64x32xi32>
    %18 = arith.sitofp %17 : vector<64x32xi32> to vector<64x32xf32>
    %cst = arith.constant dense<0.000000e+00> : vector<64x96xf32>
    %19 = tpu.matmul %18, %0, %cst {dimension_numbers = #tpu.dot_dimension_numbers<[1], [0], [0], [1], [0, 0, 1, 1], [], []>} : vector<64x32xf32>, vector<32x96xf32>, vector<64x96xf32> -> vector<64x96xf32>
    %20 = vector.broadcast %5 : vector<1x96xf32> to vector<64x96xf32>
    %21 = arith.addf %19, %20 : vector<64x96xf32>
    %cst_7 = arith.constant 0.000000e+00 : f32
    %22 = vector.broadcast %cst_7 : f32 to vector<8x32xf32>
    %23 = vector.extract_strided_slice %21 {offsets = [0, 0], sizes = [8, 96], strides = [1, 1]} : vector<64x96xf32> to vector<8x96xf32>
    %cst_8 = arith.constant dense<0.000000e+00> : vector<8x96xf32>
    %24 = tpu.matmul %22, %1, %cst_8 {dimension_numbers = #tpu.dot_dimension_numbers<[1], [0], [0], [1], [0, 0, 1, 1], [], []>} : vector<8x32xf32>, vector<32x96xf32>, vector<8x96xf32> -> vector<8x96xf32>
    %25 = arith.addf %24, %8 : vector<8x96xf32>
    %26 = vector.extract_strided_slice %23 {offsets = [0, 0], sizes = [8, 64], strides = [1, 1]} : vector<8x96xf32> to vector<8x64xf32>
    %27 = vector.extract_strided_slice %25 {offsets = [0, 0], sizes = [8, 64], strides = [1, 1]} : vector<8x96xf32> to vector<8x64xf32>
    %28 = arith.addf %26, %27 : vector<8x64xf32>
    %29 = arith.negf %28 : vector<8x64xf32>
    %30 = math.exp %29 : vector<8x64xf32>
    %cst_9 = arith.constant 1.000000e+00 : f32
    %31 = vector.broadcast %cst_9 : f32 to vector<8x64xf32>
    %32 = arith.addf %31, %30 : vector<8x64xf32>
    %33 = arith.divf %31, %32 : vector<8x64xf32>
    %34 = vector.extract_strided_slice %33 {offsets = [0, 0], sizes = [8, 32], strides = [1, 1]} : vector<8x64xf32> to vector<8x32xf32>
    %35 = vector.extract_strided_slice %33 {offsets = [0, 32], sizes = [8, 32], strides = [1, 1]} : vector<8x64xf32> to vector<8x32xf32>
    %36 = vector.extract_strided_slice %23 {offsets = [0, 64], sizes = [8, 32], strides = [1, 1]} : vector<8x96xf32> to vector<8x32xf32>
    %37 = vector.extract_strided_slice %25 {offsets = [0, 64], sizes = [8, 32], strides = [1, 1]} : vector<8x96xf32> to vector<8x32xf32>
    %38 = arith.mulf %34, %37 : vector<8x32xf32>
    %39 = arith.addf %36, %38 : vector<8x32xf32>
    %40 = math.tanh %39 : vector<8x32xf32>
    %cst_10 = arith.constant 1.000000e+00 : f32
    %41 = vector.broadcast %cst_10 : f32 to vector<8x32xf32>
    %42 = arith.subf %41, %35 : vector<8x32xf32>
    %43 = arith.mulf %42, %40 : vector<8x32xf32>
    %44 = arith.mulf %35, %22 : vector<8x32xf32>
    %45 = arith.addf %43, %44 : vector<8x32xf32>
    %c0_11 = arith.constant 0 : index
    %c0_12 = arith.constant 0 : index
    %46 = vector.load %arg4[%c0_11, %c0_12] : memref<64x32xf32, #tpu.memory_space<vmem>>, vector<8x32xf32>
    tpu.vector_store %arg4[%c0_11, %c0_12], %45 {strides = array<i32>} : memref<64x32xf32, #tpu.memory_space<vmem>>, vector<8x32xf32>,
    %47 = vector.extract_strided_slice %21 {offsets = [8, 0], sizes = [8, 96], strides = [1, 1]} : vector<64x96xf32> to vector<8x96xf32>
    %cst_13 = arith.constant dense<0.000000e+00> : vector<8x96xf32>
    %48 = tpu.matmul %45, %1, %cst_13 {dimension_numbers = #tpu.dot_dimension_numbers<[1], [0], [0], [1], [0, 0, 1, 1], [], []>} : vector<8x32xf32>, vector<32x96xf32>, vector<8x96xf32> -> vector<8x96xf32>
    %49 = arith.addf %48, %8 : vector<8x96xf32>
    %50 = vector.extract_strided_slice %47 {offsets = [0, 0], sizes = [8, 64], strides = [1, 1]} : vector<8x96xf32> to vector<8x64xf32>
    %51 = vector.extract_strided_slice %49 {offsets = [0, 0], sizes = [8, 64], strides = [1, 1]} : vector<8x96xf32> to vector<8x64xf32>
    %52 = arith.addf %50, %51 : vector<8x64xf32>
    %53 = arith.negf %52 : vector<8x64xf32>
    %54 = math.exp %53 : vector<8x64xf32>
    %cst_14 = arith.constant 1.000000e+00 : f32
    %55 = vector.broadcast %cst_14 : f32 to vector<8x64xf32>
    %56 = arith.addf %55, %54 : vector<8x64xf32>
    %57 = arith.divf %55, %56 : vector<8x64xf32>
    %58 = vector.extract_strided_slice %57 {offsets = [0, 0], sizes = [8, 32], strides = [1, 1]} : vector<8x64xf32> to vector<8x32xf32>
    %59 = vector.extract_strided_slice %57 {offsets = [0, 32], sizes = [8, 32], strides = [1, 1]} : vector<8x64xf32> to vector<8x32xf32>
    %60 = vector.extract_strided_slice %47 {offsets = [0, 64], sizes = [8, 32], strides = [1, 1]} : vector<8x96xf32> to vector<8x32xf32>
    %61 = vector.extract_strided_slice %49 {offsets = [0, 64], sizes = [8, 32], strides = [1, 1]} : vector<8x96xf32> to vector<8x32xf32>
    %62 = arith.mulf %58, %61 : vector<8x32xf32>
    %63 = arith.addf %60, %62 : vector<8x32xf32>
    %64 = math.tanh %63 : vector<8x32xf32>
    %cst_15 = arith.constant 1.000000e+00 : f32
    %65 = vector.broadcast %cst_15 : f32 to vector<8x32xf32>
    %66 = arith.subf %65, %59 : vector<8x32xf32>
    %67 = arith.mulf %66, %64 : vector<8x32xf32>
    %68 = arith.mulf %59, %45 : vector<8x32xf32>
    %69 = arith.addf %67, %68 : vector<8x32xf32>
    %c8 = arith.constant 8 : index
    %c0_16 = arith.constant 0 : index
    %70 = vector.load %arg4[%c8, %c0_16] : memref<64x32xf32, #tpu.memory_space<vmem>>, vector<8x32xf32>
    tpu.vector_store %arg4[%c8, %c0_16], %69 {strides = array<i32>} : memref<64x32xf32, #tpu.memory_space<vmem>>, vector<8x32xf32>,
    %71 = vector.extract_strided_slice %21 {offsets = [16, 0], sizes = [8, 96], strides = [1, 1]} : vector<64x96xf32> to vector<8x96xf32>
    %cst_17 = arith.constant dense<0.000000e+00> : vector<8x96xf32>
    %72 = tpu.matmul %69, %1, %cst_17 {dimension_numbers = #tpu.dot_dimension_numbers<[1], [0], [0], [1], [0, 0, 1, 1], [], []>} : vector<8x32xf32>, vector<32x96xf32>, vector<8x96xf32> -> vector<8x96xf32>
    %73 = arith.addf %72, %8 : vector<8x96xf32>
    %74 = vector.extract_strided_slice %71 {offsets = [0, 0], sizes = [8, 64], strides = [1, 1]} : vector<8x96xf32> to vector<8x64xf32>
    %75 = vector.extract_strided_slice %73 {offsets = [0, 0], sizes = [8, 64], strides = [1, 1]} : vector<8x96xf32> to vector<8x64xf32>
    %76 = arith.addf %74, %75 : vector<8x64xf32>
    %77 = arith.negf %76 : vector<8x64xf32>
    %78 = math.exp %77 : vector<8x64xf32>
    %cst_18 = arith.constant 1.000000e+00 : f32
    %79 = vector.broadcast %cst_18 : f32 to vector<8x64xf32>
    %80 = arith.addf %79, %78 : vector<8x64xf32>
    %81 = arith.divf %79, %80 : vector<8x64xf32>
    %82 = vector.extract_strided_slice %81 {offsets = [0, 0], sizes = [8, 32], strides = [1, 1]} : vector<8x64xf32> to vector<8x32xf32>
    %83 = vector.extract_strided_slice %81 {offsets = [0, 32], sizes = [8, 32], strides = [1, 1]} : vector<8x64xf32> to vector<8x32xf32>
    %84 = vector.extract_strided_slice %71 {offsets = [0, 64], sizes = [8, 32], strides = [1, 1]} : vector<8x96xf32> to vector<8x32xf32>
    %85 = vector.extract_strided_slice %73 {offsets = [0, 64], sizes = [8, 32], strides = [1, 1]} : vector<8x96xf32> to vector<8x32xf32>
    %86 = arith.mulf %82, %85 : vector<8x32xf32>
    %87 = arith.addf %84, %86 : vector<8x32xf32>
    %88 = math.tanh %87 : vector<8x32xf32>
    %cst_19 = arith.constant 1.000000e+00 : f32
    %89 = vector.broadcast %cst_19 : f32 to vector<8x32xf32>
    %90 = arith.subf %89, %83 : vector<8x32xf32>
    %91 = arith.mulf %90, %88 : vector<8x32xf32>
    %92 = arith.mulf %83, %69 : vector<8x32xf32>
    %93 = arith.addf %91, %92 : vector<8x32xf32>
    %c16 = arith.constant 16 : index
    %c0_20 = arith.constant 0 : index
    %94 = vector.load %arg4[%c16, %c0_20] : memref<64x32xf32, #tpu.memory_space<vmem>>, vector<8x32xf32>
    tpu.vector_store %arg4[%c16, %c0_20], %93 {strides = array<i32>} : memref<64x32xf32, #tpu.memory_space<vmem>>, vector<8x32xf32>,
    %95 = vector.extract_strided_slice %21 {offsets = [24, 0], sizes = [8, 96], strides = [1, 1]} : vector<64x96xf32> to vector<8x96xf32>
    %cst_21 = arith.constant dense<0.000000e+00> : vector<8x96xf32>
    %96 = tpu.matmul %93, %1, %cst_21 {dimension_numbers = #tpu.dot_dimension_numbers<[1], [0], [0], [1], [0, 0, 1, 1], [], []>} : vector<8x32xf32>, vector<32x96xf32>, vector<8x96xf32> -> vector<8x96xf32>
    %97 = arith.addf %96, %8 : vector<8x96xf32>
    %98 = vector.extract_strided_slice %95 {offsets = [0, 0], sizes = [8, 64], strides = [1, 1]} : vector<8x96xf32> to vector<8x64xf32>
    %99 = vector.extract_strided_slice %97 {offsets = [0, 0], sizes = [8, 64], strides = [1, 1]} : vector<8x96xf32> to vector<8x64xf32>
    %100 = arith.addf %98, %99 : vector<8x64xf32>
    %101 = arith.negf %100 : vector<8x64xf32>
    %102 = math.exp %101 : vector<8x64xf32>
    %cst_22 = arith.constant 1.000000e+00 : f32
    %103 = vector.broadcast %cst_22 : f32 to vector<8x64xf32>
    %104 = arith.addf %103, %102 : vector<8x64xf32>
    %105 = arith.divf %103, %104 : vector<8x64xf32>
    %106 = vector.extract_strided_slice %105 {offsets = [0, 0], sizes = [8, 32], strides = [1, 1]} : vector<8x64xf32> to vector<8x32xf32>
    %107 = vector.extract_strided_slice %105 {offsets = [0, 32], sizes = [8, 32], strides = [1, 1]} : vector<8x64xf32> to vector<8x32xf32>
    %108 = vector.extract_strided_slice %95 {offsets = [0, 64], sizes = [8, 32], strides = [1, 1]} : vector<8x96xf32> to vector<8x32xf32>
    %109 = vector.extract_strided_slice %97 {offsets = [0, 64], sizes = [8, 32], strides = [1, 1]} : vector<8x96xf32> to vector<8x32xf32>
    %110 = arith.mulf %106, %109 : vector<8x32xf32>
    %111 = arith.addf %108, %110 : vector<8x32xf32>
    %112 = math.tanh %111 : vector<8x32xf32>
    %cst_23 = arith.constant 1.000000e+00 : f32
    %113 = vector.broadcast %cst_23 : f32 to vector<8x32xf32>
    %114 = arith.subf %113, %107 : vector<8x32xf32>
    %115 = arith.mulf %114, %112 : vector<8x32xf32>
    %116 = arith.mulf %107, %93 : vector<8x32xf32>
    %117 = arith.addf %115, %116 : vector<8x32xf32>
    %c24 = arith.constant 24 : index
    %c0_24 = arith.constant 0 : index
    %118 = vector.load %arg4[%c24, %c0_24] : memref<64x32xf32, #tpu.memory_space<vmem>>, vector<8x32xf32>
    tpu.vector_store %arg4[%c24, %c0_24], %117 {strides = array<i32>} : memref<64x32xf32, #tpu.memory_space<vmem>>, vector<8x32xf32>,
    %119 = vector.extract_strided_slice %21 {offsets = [32, 0], sizes = [8, 96], strides = [1, 1]} : vector<64x96xf32> to vector<8x96xf32>
    %cst_25 = arith.constant dense<0.000000e+00> : vector<8x96xf32>
    %120 = tpu.matmul %117, %1, %cst_25 {dimension_numbers = #tpu.dot_dimension_numbers<[1], [0], [0], [1], [0, 0, 1, 1], [], []>} : vector<8x32xf32>, vector<32x96xf32>, vector<8x96xf32> -> vector<8x96xf32>
    %121 = arith.addf %120, %8 : vector<8x96xf32>
    %122 = vector.extract_strided_slice %119 {offsets = [0, 0], sizes = [8, 64], strides = [1, 1]} : vector<8x96xf32> to vector<8x64xf32>
    %123 = vector.extract_strided_slice %121 {offsets = [0, 0], sizes = [8, 64], strides = [1, 1]} : vector<8x96xf32> to vector<8x64xf32>
    %124 = arith.addf %122, %123 : vector<8x64xf32>
    %125 = arith.negf %124 : vector<8x64xf32>
    %126 = math.exp %125 : vector<8x64xf32>
    %cst_26 = arith.constant 1.000000e+00 : f32
    %127 = vector.broadcast %cst_26 : f32 to vector<8x64xf32>
    %128 = arith.addf %127, %126 : vector<8x64xf32>
    %129 = arith.divf %127, %128 : vector<8x64xf32>
    %130 = vector.extract_strided_slice %129 {offsets = [0, 0], sizes = [8, 32], strides = [1, 1]} : vector<8x64xf32> to vector<8x32xf32>
    %131 = vector.extract_strided_slice %129 {offsets = [0, 32], sizes = [8, 32], strides = [1, 1]} : vector<8x64xf32> to vector<8x32xf32>
    %132 = vector.extract_strided_slice %119 {offsets = [0, 64], sizes = [8, 32], strides = [1, 1]} : vector<8x96xf32> to vector<8x32xf32>
    %133 = vector.extract_strided_slice %121 {offsets = [0, 64], sizes = [8, 32], strides = [1, 1]} : vector<8x96xf32> to vector<8x32xf32>
    %134 = arith.mulf %130, %133 : vector<8x32xf32>
    %135 = arith.addf %132, %134 : vector<8x32xf32>
    %136 = math.tanh %135 : vector<8x32xf32>
    %cst_27 = arith.constant 1.000000e+00 : f32
    %137 = vector.broadcast %cst_27 : f32 to vector<8x32xf32>
    %138 = arith.subf %137, %131 : vector<8x32xf32>
    %139 = arith.mulf %138, %136 : vector<8x32xf32>
    %140 = arith.mulf %131, %117 : vector<8x32xf32>
    %141 = arith.addf %139, %140 : vector<8x32xf32>
    %c32_28 = arith.constant 32 : index
    %c0_29 = arith.constant 0 : index
    %142 = vector.load %arg4[%c32_28, %c0_29] : memref<64x32xf32, #tpu.memory_space<vmem>>, vector<8x32xf32>
    tpu.vector_store %arg4[%c32_28, %c0_29], %141 {strides = array<i32>} : memref<64x32xf32, #tpu.memory_space<vmem>>, vector<8x32xf32>,
    %143 = vector.extract_strided_slice %21 {offsets = [40, 0], sizes = [8, 96], strides = [1, 1]} : vector<64x96xf32> to vector<8x96xf32>
    %cst_30 = arith.constant dense<0.000000e+00> : vector<8x96xf32>
    %144 = tpu.matmul %141, %1, %cst_30 {dimension_numbers = #tpu.dot_dimension_numbers<[1], [0], [0], [1], [0, 0, 1, 1], [], []>} : vector<8x32xf32>, vector<32x96xf32>, vector<8x96xf32> -> vector<8x96xf32>
    %145 = arith.addf %144, %8 : vector<8x96xf32>
    %146 = vector.extract_strided_slice %143 {offsets = [0, 0], sizes = [8, 64], strides = [1, 1]} : vector<8x96xf32> to vector<8x64xf32>
    %147 = vector.extract_strided_slice %145 {offsets = [0, 0], sizes = [8, 64], strides = [1, 1]} : vector<8x96xf32> to vector<8x64xf32>
    %148 = arith.addf %146, %147 : vector<8x64xf32>
    %149 = arith.negf %148 : vector<8x64xf32>
    %150 = math.exp %149 : vector<8x64xf32>
    %cst_31 = arith.constant 1.000000e+00 : f32
    %151 = vector.broadcast %cst_31 : f32 to vector<8x64xf32>
    %152 = arith.addf %151, %150 : vector<8x64xf32>
    %153 = arith.divf %151, %152 : vector<8x64xf32>
    %154 = vector.extract_strided_slice %153 {offsets = [0, 0], sizes = [8, 32], strides = [1, 1]} : vector<8x64xf32> to vector<8x32xf32>
    %155 = vector.extract_strided_slice %153 {offsets = [0, 32], sizes = [8, 32], strides = [1, 1]} : vector<8x64xf32> to vector<8x32xf32>
    %156 = vector.extract_strided_slice %143 {offsets = [0, 64], sizes = [8, 32], strides = [1, 1]} : vector<8x96xf32> to vector<8x32xf32>
    %157 = vector.extract_strided_slice %145 {offsets = [0, 64], sizes = [8, 32], strides = [1, 1]} : vector<8x96xf32> to vector<8x32xf32>
    %158 = arith.mulf %154, %157 : vector<8x32xf32>
    %159 = arith.addf %156, %158 : vector<8x32xf32>
    %160 = math.tanh %159 : vector<8x32xf32>
    %cst_32 = arith.constant 1.000000e+00 : f32
    %161 = vector.broadcast %cst_32 : f32 to vector<8x32xf32>
    %162 = arith.subf %161, %155 : vector<8x32xf32>
    %163 = arith.mulf %162, %160 : vector<8x32xf32>
    %164 = arith.mulf %155, %141 : vector<8x32xf32>
    %165 = arith.addf %163, %164 : vector<8x32xf32>
    %c40 = arith.constant 40 : index
    %c0_33 = arith.constant 0 : index
    %166 = vector.load %arg4[%c40, %c0_33] : memref<64x32xf32, #tpu.memory_space<vmem>>, vector<8x32xf32>
    tpu.vector_store %arg4[%c40, %c0_33], %165 {strides = array<i32>} : memref<64x32xf32, #tpu.memory_space<vmem>>, vector<8x32xf32>,
    %167 = vector.extract_strided_slice %21 {offsets = [48, 0], sizes = [8, 96], strides = [1, 1]} : vector<64x96xf32> to vector<8x96xf32>
    %cst_34 = arith.constant dense<0.000000e+00> : vector<8x96xf32>
    %168 = tpu.matmul %165, %1, %cst_34 {dimension_numbers = #tpu.dot_dimension_numbers<[1], [0], [0], [1], [0, 0, 1, 1], [], []>} : vector<8x32xf32>, vector<32x96xf32>, vector<8x96xf32> -> vector<8x96xf32>
    %169 = arith.addf %168, %8 : vector<8x96xf32>
    %170 = vector.extract_strided_slice %167 {offsets = [0, 0], sizes = [8, 64], strides = [1, 1]} : vector<8x96xf32> to vector<8x64xf32>
    %171 = vector.extract_strided_slice %169 {offsets = [0, 0], sizes = [8, 64], strides = [1, 1]} : vector<8x96xf32> to vector<8x64xf32>
    %172 = arith.addf %170, %171 : vector<8x64xf32>
    %173 = arith.negf %172 : vector<8x64xf32>
    %174 = math.exp %173 : vector<8x64xf32>
    %cst_35 = arith.constant 1.000000e+00 : f32
    %175 = vector.broadcast %cst_35 : f32 to vector<8x64xf32>
    %176 = arith.addf %175, %174 : vector<8x64xf32>
    %177 = arith.divf %175, %176 : vector<8x64xf32>
    %178 = vector.extract_strided_slice %177 {offsets = [0, 0], sizes = [8, 32], strides = [1, 1]} : vector<8x64xf32> to vector<8x32xf32>
    %179 = vector.extract_strided_slice %177 {offsets = [0, 32], sizes = [8, 32], strides = [1, 1]} : vector<8x64xf32> to vector<8x32xf32>
    %180 = vector.extract_strided_slice %167 {offsets = [0, 64], sizes = [8, 32], strides = [1, 1]} : vector<8x96xf32> to vector<8x32xf32>
    %181 = vector.extract_strided_slice %169 {offsets = [0, 64], sizes = [8, 32], strides = [1, 1]} : vector<8x96xf32> to vector<8x32xf32>
    %182 = arith.mulf %178, %181 : vector<8x32xf32>
    %183 = arith.addf %180, %182 : vector<8x32xf32>
    %184 = math.tanh %183 : vector<8x32xf32>
    %cst_36 = arith.constant 1.000000e+00 : f32
    %185 = vector.broadcast %cst_36 : f32 to vector<8x32xf32>
    %186 = arith.subf %185, %179 : vector<8x32xf32>
    %187 = arith.mulf %186, %184 : vector<8x32xf32>
    %188 = arith.mulf %179, %165 : vector<8x32xf32>
    %189 = arith.addf %187, %188 : vector<8x32xf32>
    %c48 = arith.constant 48 : index
    %c0_37 = arith.constant 0 : index
    %190 = vector.load %arg4[%c48, %c0_37] : memref<64x32xf32, #tpu.memory_space<vmem>>, vector<8x32xf32>
    tpu.vector_store %arg4[%c48, %c0_37], %189 {strides = array<i32>} : memref<64x32xf32, #tpu.memory_space<vmem>>, vector<8x32xf32>,
    %191 = vector.extract_strided_slice %21 {offsets = [56, 0], sizes = [8, 96], strides = [1, 1]} : vector<64x96xf32> to vector<8x96xf32>
    %cst_38 = arith.constant dense<0.000000e+00> : vector<8x96xf32>
    %192 = tpu.matmul %189, %1, %cst_38 {dimension_numbers = #tpu.dot_dimension_numbers<[1], [0], [0], [1], [0, 0, 1, 1], [], []>} : vector<8x32xf32>, vector<32x96xf32>, vector<8x96xf32> -> vector<8x96xf32>
    %193 = arith.addf %192, %8 : vector<8x96xf32>
    %194 = vector.extract_strided_slice %191 {offsets = [0, 0], sizes = [8, 64], strides = [1, 1]} : vector<8x96xf32> to vector<8x64xf32>
    %195 = vector.extract_strided_slice %193 {offsets = [0, 0], sizes = [8, 64], strides = [1, 1]} : vector<8x96xf32> to vector<8x64xf32>
    %196 = arith.addf %194, %195 : vector<8x64xf32>
    %197 = arith.negf %196 : vector<8x64xf32>
    %198 = math.exp %197 : vector<8x64xf32>
    %cst_39 = arith.constant 1.000000e+00 : f32
    %199 = vector.broadcast %cst_39 : f32 to vector<8x64xf32>
    %200 = arith.addf %199, %198 : vector<8x64xf32>
    %201 = arith.divf %199, %200 : vector<8x64xf32>
    %202 = vector.extract_strided_slice %201 {offsets = [0, 0], sizes = [8, 32], strides = [1, 1]} : vector<8x64xf32> to vector<8x32xf32>
    %203 = vector.extract_strided_slice %201 {offsets = [0, 32], sizes = [8, 32], strides = [1, 1]} : vector<8x64xf32> to vector<8x32xf32>
    %204 = vector.extract_strided_slice %191 {offsets = [0, 64], sizes = [8, 32], strides = [1, 1]} : vector<8x96xf32> to vector<8x32xf32>
    %205 = vector.extract_strided_slice %193 {offsets = [0, 64], sizes = [8, 32], strides = [1, 1]} : vector<8x96xf32> to vector<8x32xf32>
    %206 = arith.mulf %202, %205 : vector<8x32xf32>
    %207 = arith.addf %204, %206 : vector<8x32xf32>
    %208 = math.tanh %207 : vector<8x32xf32>
    %cst_40 = arith.constant 1.000000e+00 : f32
    %209 = vector.broadcast %cst_40 : f32 to vector<8x32xf32>
    %210 = arith.subf %209, %203 : vector<8x32xf32>
    %211 = arith.mulf %210, %208 : vector<8x32xf32>
    %212 = arith.mulf %203, %189 : vector<8x32xf32>
    %213 = arith.addf %211, %212 : vector<8x32xf32>
    %c56 = arith.constant 56 : index
    %c0_41 = arith.constant 0 : index
    %214 = vector.load %arg4[%c56, %c0_41] : memref<64x32xf32, #tpu.memory_space<vmem>>, vector<8x32xf32>
    tpu.vector_store %arg4[%c56, %c0_41], %213 {strides = array<i32>} : memref<64x32xf32, #tpu.memory_space<vmem>>, vector<8x32xf32>,
    %c0_42 = arith.constant 0 : index
    %c0_43 = arith.constant 0 : index
    %215 = vector.load %arg4[%c0_42, %c0_43] : memref<64x32xf32, #tpu.memory_space<vmem>>, vector<64x32xf32>
    %cst_44 = arith.constant dense<0.000000e+00> : vector<64x96xf32>
    %216 = tpu.matmul %215, %2, %cst_44 {dimension_numbers = #tpu.dot_dimension_numbers<[1], [0], [0], [1], [0, 0, 1, 1], [], []>} : vector<64x32xf32>, vector<32x96xf32>, vector<64x96xf32> -> vector<64x96xf32>
    %217 = vector.broadcast %9 : vector<1x96xf32> to vector<64x96xf32>
    %218 = arith.addf %216, %217 : vector<64x96xf32>
    %cst_45 = arith.constant 0.000000e+00 : f32
    %219 = vector.broadcast %cst_45 : f32 to vector<8x32xf32>
    %220 = vector.extract_strided_slice %218 {offsets = [0, 0], sizes = [8, 96], strides = [1, 1]} : vector<64x96xf32> to vector<8x96xf32>
    %cst_46 = arith.constant dense<0.000000e+00> : vector<8x96xf32>
    %221 = tpu.matmul %219, %3, %cst_46 {dimension_numbers = #tpu.dot_dimension_numbers<[1], [0], [0], [1], [0, 0, 1, 1], [], []>} : vector<8x32xf32>, vector<32x96xf32>, vector<8x96xf32> -> vector<8x96xf32>
    %222 = arith.addf %221, %12 : vector<8x96xf32>
    %223 = vector.extract_strided_slice %220 {offsets = [0, 0], sizes = [8, 64], strides = [1, 1]} : vector<8x96xf32> to vector<8x64xf32>
    %224 = vector.extract_strided_slice %222 {offsets = [0, 0], sizes = [8, 64], strides = [1, 1]} : vector<8x96xf32> to vector<8x64xf32>
    %225 = arith.addf %223, %224 : vector<8x64xf32>
    %226 = arith.negf %225 : vector<8x64xf32>
    %227 = math.exp %226 : vector<8x64xf32>
    %cst_47 = arith.constant 1.000000e+00 : f32
    %228 = vector.broadcast %cst_47 : f32 to vector<8x64xf32>
    %229 = arith.addf %228, %227 : vector<8x64xf32>
    %230 = arith.divf %228, %229 : vector<8x64xf32>
    %231 = vector.extract_strided_slice %230 {offsets = [0, 0], sizes = [8, 32], strides = [1, 1]} : vector<8x64xf32> to vector<8x32xf32>
    %232 = vector.extract_strided_slice %230 {offsets = [0, 32], sizes = [8, 32], strides = [1, 1]} : vector<8x64xf32> to vector<8x32xf32>
    %233 = vector.extract_strided_slice %220 {offsets = [0, 64], sizes = [8, 32], strides = [1, 1]} : vector<8x96xf32> to vector<8x32xf32>
    %234 = vector.extract_strided_slice %222 {offsets = [0, 64], sizes = [8, 32], strides = [1, 1]} : vector<8x96xf32> to vector<8x32xf32>
    %235 = arith.mulf %231, %234 : vector<8x32xf32>
    %236 = arith.addf %233, %235 : vector<8x32xf32>
    %237 = math.tanh %236 : vector<8x32xf32>
    %cst_48 = arith.constant 1.000000e+00 : f32
    %238 = vector.broadcast %cst_48 : f32 to vector<8x32xf32>
    %239 = arith.subf %238, %232 : vector<8x32xf32>
    %240 = arith.mulf %239, %237 : vector<8x32xf32>
    %241 = arith.mulf %232, %219 : vector<8x32xf32>
    %242 = arith.addf %240, %241 : vector<8x32xf32>
    %243 = vector.extract_strided_slice %218 {offsets = [8, 0], sizes = [8, 96], strides = [1, 1]} : vector<64x96xf32> to vector<8x96xf32>
    %cst_49 = arith.constant dense<0.000000e+00> : vector<8x96xf32>
    %244 = tpu.matmul %242, %3, %cst_49 {dimension_numbers = #tpu.dot_dimension_numbers<[1], [0], [0], [1], [0, 0, 1, 1], [], []>} : vector<8x32xf32>, vector<32x96xf32>, vector<8x96xf32> -> vector<8x96xf32>
    %245 = arith.addf %244, %12 : vector<8x96xf32>
    %246 = vector.extract_strided_slice %243 {offsets = [0, 0], sizes = [8, 64], strides = [1, 1]} : vector<8x96xf32> to vector<8x64xf32>
    %247 = vector.extract_strided_slice %245 {offsets = [0, 0], sizes = [8, 64], strides = [1, 1]} : vector<8x96xf32> to vector<8x64xf32>
    %248 = arith.addf %246, %247 : vector<8x64xf32>
    %249 = arith.negf %248 : vector<8x64xf32>
    %250 = math.exp %249 : vector<8x64xf32>
    %cst_50 = arith.constant 1.000000e+00 : f32
    %251 = vector.broadcast %cst_50 : f32 to vector<8x64xf32>
    %252 = arith.addf %251, %250 : vector<8x64xf32>
    %253 = arith.divf %251, %252 : vector<8x64xf32>
    %254 = vector.extract_strided_slice %253 {offsets = [0, 0], sizes = [8, 32], strides = [1, 1]} : vector<8x64xf32> to vector<8x32xf32>
    %255 = vector.extract_strided_slice %253 {offsets = [0, 32], sizes = [8, 32], strides = [1, 1]} : vector<8x64xf32> to vector<8x32xf32>
    %256 = vector.extract_strided_slice %243 {offsets = [0, 64], sizes = [8, 32], strides = [1, 1]} : vector<8x96xf32> to vector<8x32xf32>
    %257 = vector.extract_strided_slice %245 {offsets = [0, 64], sizes = [8, 32], strides = [1, 1]} : vector<8x96xf32> to vector<8x32xf32>
    %258 = arith.mulf %254, %257 : vector<8x32xf32>
    %259 = arith.addf %256, %258 : vector<8x32xf32>
    %260 = math.tanh %259 : vector<8x32xf32>
    %cst_51 = arith.constant 1.000000e+00 : f32
    %261 = vector.broadcast %cst_51 : f32 to vector<8x32xf32>
    %262 = arith.subf %261, %255 : vector<8x32xf32>
    %263 = arith.mulf %262, %260 : vector<8x32xf32>
    %264 = arith.mulf %255, %242 : vector<8x32xf32>
    %265 = arith.addf %263, %264 : vector<8x32xf32>
    %266 = vector.extract_strided_slice %218 {offsets = [16, 0], sizes = [8, 96], strides = [1, 1]} : vector<64x96xf32> to vector<8x96xf32>
    %cst_52 = arith.constant dense<0.000000e+00> : vector<8x96xf32>
    %267 = tpu.matmul %265, %3, %cst_52 {dimension_numbers = #tpu.dot_dimension_numbers<[1], [0], [0], [1], [0, 0, 1, 1], [], []>} : vector<8x32xf32>, vector<32x96xf32>, vector<8x96xf32> -> vector<8x96xf32>
    %268 = arith.addf %267, %12 : vector<8x96xf32>
    %269 = vector.extract_strided_slice %266 {offsets = [0, 0], sizes = [8, 64], strides = [1, 1]} : vector<8x96xf32> to vector<8x64xf32>
    %270 = vector.extract_strided_slice %268 {offsets = [0, 0], sizes = [8, 64], strides = [1, 1]} : vector<8x96xf32> to vector<8x64xf32>
    %271 = arith.addf %269, %270 : vector<8x64xf32>
    %272 = arith.negf %271 : vector<8x64xf32>
    %273 = math.exp %272 : vector<8x64xf32>
    %cst_53 = arith.constant 1.000000e+00 : f32
    %274 = vector.broadcast %cst_53 : f32 to vector<8x64xf32>
    %275 = arith.addf %274, %273 : vector<8x64xf32>
    %276 = arith.divf %274, %275 : vector<8x64xf32>
    %277 = vector.extract_strided_slice %276 {offsets = [0, 0], sizes = [8, 32], strides = [1, 1]} : vector<8x64xf32> to vector<8x32xf32>
    %278 = vector.extract_strided_slice %276 {offsets = [0, 32], sizes = [8, 32], strides = [1, 1]} : vector<8x64xf32> to vector<8x32xf32>
    %279 = vector.extract_strided_slice %266 {offsets = [0, 64], sizes = [8, 32], strides = [1, 1]} : vector<8x96xf32> to vector<8x32xf32>
    %280 = vector.extract_strided_slice %268 {offsets = [0, 64], sizes = [8, 32], strides = [1, 1]} : vector<8x96xf32> to vector<8x32xf32>
    %281 = arith.mulf %277, %280 : vector<8x32xf32>
    %282 = arith.addf %279, %281 : vector<8x32xf32>
    %283 = math.tanh %282 : vector<8x32xf32>
    %cst_54 = arith.constant 1.000000e+00 : f32
    %284 = vector.broadcast %cst_54 : f32 to vector<8x32xf32>
    %285 = arith.subf %284, %278 : vector<8x32xf32>
    %286 = arith.mulf %285, %283 : vector<8x32xf32>
    %287 = arith.mulf %278, %265 : vector<8x32xf32>
    %288 = arith.addf %286, %287 : vector<8x32xf32>
    %289 = vector.extract_strided_slice %218 {offsets = [24, 0], sizes = [8, 96], strides = [1, 1]} : vector<64x96xf32> to vector<8x96xf32>
    %cst_55 = arith.constant dense<0.000000e+00> : vector<8x96xf32>
    %290 = tpu.matmul %288, %3, %cst_55 {dimension_numbers = #tpu.dot_dimension_numbers<[1], [0], [0], [1], [0, 0, 1, 1], [], []>} : vector<8x32xf32>, vector<32x96xf32>, vector<8x96xf32> -> vector<8x96xf32>
    %291 = arith.addf %290, %12 : vector<8x96xf32>
    %292 = vector.extract_strided_slice %289 {offsets = [0, 0], sizes = [8, 64], strides = [1, 1]} : vector<8x96xf32> to vector<8x64xf32>
    %293 = vector.extract_strided_slice %291 {offsets = [0, 0], sizes = [8, 64], strides = [1, 1]} : vector<8x96xf32> to vector<8x64xf32>
    %294 = arith.addf %292, %293 : vector<8x64xf32>
    %295 = arith.negf %294 : vector<8x64xf32>
    %296 = math.exp %295 : vector<8x64xf32>
    %cst_56 = arith.constant 1.000000e+00 : f32
    %297 = vector.broadcast %cst_56 : f32 to vector<8x64xf32>
    %298 = arith.addf %297, %296 : vector<8x64xf32>
    %299 = arith.divf %297, %298 : vector<8x64xf32>
    %300 = vector.extract_strided_slice %299 {offsets = [0, 0], sizes = [8, 32], strides = [1, 1]} : vector<8x64xf32> to vector<8x32xf32>
    %301 = vector.extract_strided_slice %299 {offsets = [0, 32], sizes = [8, 32], strides = [1, 1]} : vector<8x64xf32> to vector<8x32xf32>
    %302 = vector.extract_strided_slice %289 {offsets = [0, 64], sizes = [8, 32], strides = [1, 1]} : vector<8x96xf32> to vector<8x32xf32>
    %303 = vector.extract_strided_slice %291 {offsets = [0, 64], sizes = [8, 32], strides = [1, 1]} : vector<8x96xf32> to vector<8x32xf32>
    %304 = arith.mulf %300, %303 : vector<8x32xf32>
    %305 = arith.addf %302, %304 : vector<8x32xf32>
    %306 = math.tanh %305 : vector<8x32xf32>
    %cst_57 = arith.constant 1.000000e+00 : f32
    %307 = vector.broadcast %cst_57 : f32 to vector<8x32xf32>
    %308 = arith.subf %307, %301 : vector<8x32xf32>
    %309 = arith.mulf %308, %306 : vector<8x32xf32>
    %310 = arith.mulf %301, %288 : vector<8x32xf32>
    %311 = arith.addf %309, %310 : vector<8x32xf32>
    %312 = vector.extract_strided_slice %218 {offsets = [32, 0], sizes = [8, 96], strides = [1, 1]} : vector<64x96xf32> to vector<8x96xf32>
    %cst_58 = arith.constant dense<0.000000e+00> : vector<8x96xf32>
    %313 = tpu.matmul %311, %3, %cst_58 {dimension_numbers = #tpu.dot_dimension_numbers<[1], [0], [0], [1], [0, 0, 1, 1], [], []>} : vector<8x32xf32>, vector<32x96xf32>, vector<8x96xf32> -> vector<8x96xf32>
    %314 = arith.addf %313, %12 : vector<8x96xf32>
    %315 = vector.extract_strided_slice %312 {offsets = [0, 0], sizes = [8, 64], strides = [1, 1]} : vector<8x96xf32> to vector<8x64xf32>
    %316 = vector.extract_strided_slice %314 {offsets = [0, 0], sizes = [8, 64], strides = [1, 1]} : vector<8x96xf32> to vector<8x64xf32>
    %317 = arith.addf %315, %316 : vector<8x64xf32>
    %318 = arith.negf %317 : vector<8x64xf32>
    %319 = math.exp %318 : vector<8x64xf32>
    %cst_59 = arith.constant 1.000000e+00 : f32
    %320 = vector.broadcast %cst_59 : f32 to vector<8x64xf32>
    %321 = arith.addf %320, %319 : vector<8x64xf32>
    %322 = arith.divf %320, %321 : vector<8x64xf32>
    %323 = vector.extract_strided_slice %322 {offsets = [0, 0], sizes = [8, 32], strides = [1, 1]} : vector<8x64xf32> to vector<8x32xf32>
    %324 = vector.extract_strided_slice %322 {offsets = [0, 32], sizes = [8, 32], strides = [1, 1]} : vector<8x64xf32> to vector<8x32xf32>
    %325 = vector.extract_strided_slice %312 {offsets = [0, 64], sizes = [8, 32], strides = [1, 1]} : vector<8x96xf32> to vector<8x32xf32>
    %326 = vector.extract_strided_slice %314 {offsets = [0, 64], sizes = [8, 32], strides = [1, 1]} : vector<8x96xf32> to vector<8x32xf32>
    %327 = arith.mulf %323, %326 : vector<8x32xf32>
    %328 = arith.addf %325, %327 : vector<8x32xf32>
    %329 = math.tanh %328 : vector<8x32xf32>
    %cst_60 = arith.constant 1.000000e+00 : f32
    %330 = vector.broadcast %cst_60 : f32 to vector<8x32xf32>
    %331 = arith.subf %330, %324 : vector<8x32xf32>
    %332 = arith.mulf %331, %329 : vector<8x32xf32>
    %333 = arith.mulf %324, %311 : vector<8x32xf32>
    %334 = arith.addf %332, %333 : vector<8x32xf32>
    %335 = vector.extract_strided_slice %218 {offsets = [40, 0], sizes = [8, 96], strides = [1, 1]} : vector<64x96xf32> to vector<8x96xf32>
    %cst_61 = arith.constant dense<0.000000e+00> : vector<8x96xf32>
    %336 = tpu.matmul %334, %3, %cst_61 {dimension_numbers = #tpu.dot_dimension_numbers<[1], [0], [0], [1], [0, 0, 1, 1], [], []>} : vector<8x32xf32>, vector<32x96xf32>, vector<8x96xf32> -> vector<8x96xf32>
    %337 = arith.addf %336, %12 : vector<8x96xf32>
    %338 = vector.extract_strided_slice %335 {offsets = [0, 0], sizes = [8, 64], strides = [1, 1]} : vector<8x96xf32> to vector<8x64xf32>
    %339 = vector.extract_strided_slice %337 {offsets = [0, 0], sizes = [8, 64], strides = [1, 1]} : vector<8x96xf32> to vector<8x64xf32>
    %340 = arith.addf %338, %339 : vector<8x64xf32>
    %341 = arith.negf %340 : vector<8x64xf32>
    %342 = math.exp %341 : vector<8x64xf32>
    %cst_62 = arith.constant 1.000000e+00 : f32
    %343 = vector.broadcast %cst_62 : f32 to vector<8x64xf32>
    %344 = arith.addf %343, %342 : vector<8x64xf32>
    %345 = arith.divf %343, %344 : vector<8x64xf32>
    %346 = vector.extract_strided_slice %345 {offsets = [0, 0], sizes = [8, 32], strides = [1, 1]} : vector<8x64xf32> to vector<8x32xf32>
    %347 = vector.extract_strided_slice %345 {offsets = [0, 32], sizes = [8, 32], strides = [1, 1]} : vector<8x64xf32> to vector<8x32xf32>
    %348 = vector.extract_strided_slice %335 {offsets = [0, 64], sizes = [8, 32], strides = [1, 1]} : vector<8x96xf32> to vector<8x32xf32>
    %349 = vector.extract_strided_slice %337 {offsets = [0, 64], sizes = [8, 32], strides = [1, 1]} : vector<8x96xf32> to vector<8x32xf32>
    %350 = arith.mulf %346, %349 : vector<8x32xf32>
    %351 = arith.addf %348, %350 : vector<8x32xf32>
    %352 = math.tanh %351 : vector<8x32xf32>
    %cst_63 = arith.constant 1.000000e+00 : f32
    %353 = vector.broadcast %cst_63 : f32 to vector<8x32xf32>
    %354 = arith.subf %353, %347 : vector<8x32xf32>
    %355 = arith.mulf %354, %352 : vector<8x32xf32>
    %356 = arith.mulf %347, %334 : vector<8x32xf32>
    %357 = arith.addf %355, %356 : vector<8x32xf32>
    %358 = vector.extract_strided_slice %218 {offsets = [48, 0], sizes = [8, 96], strides = [1, 1]} : vector<64x96xf32> to vector<8x96xf32>
    %cst_64 = arith.constant dense<0.000000e+00> : vector<8x96xf32>
    %359 = tpu.matmul %357, %3, %cst_64 {dimension_numbers = #tpu.dot_dimension_numbers<[1], [0], [0], [1], [0, 0, 1, 1], [], []>} : vector<8x32xf32>, vector<32x96xf32>, vector<8x96xf32> -> vector<8x96xf32>
    %360 = arith.addf %359, %12 : vector<8x96xf32>
    %361 = vector.extract_strided_slice %358 {offsets = [0, 0], sizes = [8, 64], strides = [1, 1]} : vector<8x96xf32> to vector<8x64xf32>
    %362 = vector.extract_strided_slice %360 {offsets = [0, 0], sizes = [8, 64], strides = [1, 1]} : vector<8x96xf32> to vector<8x64xf32>
    %363 = arith.addf %361, %362 : vector<8x64xf32>
    %364 = arith.negf %363 : vector<8x64xf32>
    %365 = math.exp %364 : vector<8x64xf32>
    %cst_65 = arith.constant 1.000000e+00 : f32
    %366 = vector.broadcast %cst_65 : f32 to vector<8x64xf32>
    %367 = arith.addf %366, %365 : vector<8x64xf32>
    %368 = arith.divf %366, %367 : vector<8x64xf32>
    %369 = vector.extract_strided_slice %368 {offsets = [0, 0], sizes = [8, 32], strides = [1, 1]} : vector<8x64xf32> to vector<8x32xf32>
    %370 = vector.extract_strided_slice %368 {offsets = [0, 32], sizes = [8, 32], strides = [1, 1]} : vector<8x64xf32> to vector<8x32xf32>
    %371 = vector.extract_strided_slice %358 {offsets = [0, 64], sizes = [8, 32], strides = [1, 1]} : vector<8x96xf32> to vector<8x32xf32>
    %372 = vector.extract_strided_slice %360 {offsets = [0, 64], sizes = [8, 32], strides = [1, 1]} : vector<8x96xf32> to vector<8x32xf32>
    %373 = arith.mulf %369, %372 : vector<8x32xf32>
    %374 = arith.addf %371, %373 : vector<8x32xf32>
    %375 = math.tanh %374 : vector<8x32xf32>
    %cst_66 = arith.constant 1.000000e+00 : f32
    %376 = vector.broadcast %cst_66 : f32 to vector<8x32xf32>
    %377 = arith.subf %376, %370 : vector<8x32xf32>
    %378 = arith.mulf %377, %375 : vector<8x32xf32>
    %379 = arith.mulf %370, %357 : vector<8x32xf32>
    %380 = arith.addf %378, %379 : vector<8x32xf32>
    %381 = vector.extract_strided_slice %218 {offsets = [56, 0], sizes = [8, 96], strides = [1, 1]} : vector<64x96xf32> to vector<8x96xf32>
    %cst_67 = arith.constant dense<0.000000e+00> : vector<8x96xf32>
    %382 = tpu.matmul %380, %3, %cst_67 {dimension_numbers = #tpu.dot_dimension_numbers<[1], [0], [0], [1], [0, 0, 1, 1], [], []>} : vector<8x32xf32>, vector<32x96xf32>, vector<8x96xf32> -> vector<8x96xf32>
    %383 = arith.addf %382, %12 : vector<8x96xf32>
    %384 = vector.extract_strided_slice %381 {offsets = [0, 0], sizes = [8, 64], strides = [1, 1]} : vector<8x96xf32> to vector<8x64xf32>
    %385 = vector.extract_strided_slice %383 {offsets = [0, 0], sizes = [8, 64], strides = [1, 1]} : vector<8x96xf32> to vector<8x64xf32>
    %386 = arith.addf %384, %385 : vector<8x64xf32>
    %387 = arith.negf %386 : vector<8x64xf32>
    %388 = math.exp %387 : vector<8x64xf32>
    %cst_68 = arith.constant 1.000000e+00 : f32
    %389 = vector.broadcast %cst_68 : f32 to vector<8x64xf32>
    %390 = arith.addf %389, %388 : vector<8x64xf32>
    %391 = arith.divf %389, %390 : vector<8x64xf32>
    %392 = vector.extract_strided_slice %391 {offsets = [0, 0], sizes = [8, 32], strides = [1, 1]} : vector<8x64xf32> to vector<8x32xf32>
    %393 = vector.extract_strided_slice %391 {offsets = [0, 32], sizes = [8, 32], strides = [1, 1]} : vector<8x64xf32> to vector<8x32xf32>
    %394 = vector.extract_strided_slice %381 {offsets = [0, 64], sizes = [8, 32], strides = [1, 1]} : vector<8x96xf32> to vector<8x32xf32>
    %395 = vector.extract_strided_slice %383 {offsets = [0, 64], sizes = [8, 32], strides = [1, 1]} : vector<8x96xf32> to vector<8x32xf32>
    %396 = arith.mulf %392, %395 : vector<8x32xf32>
    %397 = arith.addf %394, %396 : vector<8x32xf32>
    %398 = math.tanh %397 : vector<8x32xf32>
    %cst_69 = arith.constant 1.000000e+00 : f32
    %399 = vector.broadcast %cst_69 : f32 to vector<8x32xf32>
    %400 = arith.subf %399, %393 : vector<8x32xf32>
    %401 = arith.mulf %400, %398 : vector<8x32xf32>
    %402 = arith.mulf %393, %380 : vector<8x32xf32>
    %403 = arith.addf %401, %402 : vector<8x32xf32>
    %c0_70 = arith.constant 0 : index
    %c0_71 = arith.constant 0 : index
    %404 = vector.load %arg2[%c0_70, %c0_71] : memref<312x32xf32, #tpu.memory_space<vmem>>, vector<32x32xf32>
    %c32_72 = arith.constant 32 : index
    %c0_73 = arith.constant 0 : index
    %405 = vector.load %arg2[%c32_72, %c0_73] : memref<312x32xf32, #tpu.memory_space<vmem>>, vector<32x32xf32>
    %c64_74 = arith.constant 64 : index
    %c0_75 = arith.constant 0 : index
    %406 = vector.load %arg2[%c64_74, %c0_75] : memref<312x32xf32, #tpu.memory_space<vmem>>, vector<64x32xf32>
    %c128_76 = arith.constant 128 : index
    %c0_77 = arith.constant 0 : index
    %407 = vector.load %arg2[%c128_76, %c0_77] : memref<312x32xf32, #tpu.memory_space<vmem>>, vector<8x32xf32>
    %408 = vector.extract_strided_slice %407 {offsets = [0, 0], sizes = [1, 32], strides = [1, 1]} : vector<8x32xf32> to vector<1x32xf32>
    %409 = vector.extract_strided_slice %407 {offsets = [1, 0], sizes = [1, 32], strides = [1, 1]} : vector<8x32xf32> to vector<1x32xf32>
    %cst_78 = arith.constant dense<0.000000e+00> : vector<8x32xf32>
    %410 = tpu.matmul %403, %404, %cst_78 {dimension_numbers = #tpu.dot_dimension_numbers<[1], [0], [0], [1], [0, 0, 1, 1], [], []>} : vector<8x32xf32>, vector<32x32xf32>, vector<8x32xf32> -> vector<8x32xf32>
    %411 = vector.broadcast %408 : vector<1x32xf32> to vector<8x32xf32>
    %412 = arith.addf %410, %411 : vector<8x32xf32>
    %cst_79 = arith.constant dense<0xFF800000> : vector<8xf32>
    %413 = vector.multi_reduction <maximumf>, %412, %cst_79 [1] : vector<8x32xf32> to vector<8xf32>
    %414 = vector.shape_cast %413 : vector<8xf32> to vector<8x1xf32>
    %415 = vector.broadcast %414 : vector<8x1xf32> to vector<8x32xf32>
    %416 = arith.subf %412, %415 : vector<8x32xf32>
    %417 = math.exp %416 : vector<8x32xf32>
    %cst_80 = arith.constant dense<0.000000e+00> : vector<8xf32>
    %418 = vector.multi_reduction <add>, %417, %cst_80 [1] : vector<8x32xf32> to vector<8xf32>
    %419 = vector.shape_cast %418 : vector<8xf32> to vector<8x1xf32>
    %420 = vector.broadcast %419 : vector<8x1xf32> to vector<8x32xf32>
    %421 = arith.divf %417, %420 : vector<8x32xf32>
    %cst_81 = arith.constant dense<0.000000e+00> : vector<8x32xf32>
    %422 = tpu.matmul %421, %405, %cst_81 {dimension_numbers = #tpu.dot_dimension_numbers<[1], [0], [0], [1], [0, 0, 1, 1], [], []>} : vector<8x32xf32>, vector<32x32xf32>, vector<8x32xf32> -> vector<8x32xf32>
    %423 = tpu.concatenate %403, %422 in 1 : vector<8x32xf32>, vector<8x32xf32> -> vector<8x64xf32>
    %cst_82 = arith.constant dense<0.000000e+00> : vector<8x32xf32>
    %424 = tpu.matmul %423, %406, %cst_82 {dimension_numbers = #tpu.dot_dimension_numbers<[1], [0], [0], [1], [0, 0, 1, 1], [], []>} : vector<8x64xf32>, vector<64x32xf32>, vector<8x32xf32> -> vector<8x32xf32>
    %425 = vector.broadcast %409 : vector<1x32xf32> to vector<8x32xf32>
    %426 = arith.addf %424, %425 : vector<8x32xf32>
    %c136 = arith.constant 136 : index
    %c0_83 = arith.constant 0 : index
    %427 = vector.load %arg2[%c136, %c0_83] : memref<312x32xf32, #tpu.memory_space<vmem>>, vector<32x32xf32>
    %c168 = arith.constant 168 : index
    %c0_84 = arith.constant 0 : index
    %428 = vector.load %arg2[%c168, %c0_84] : memref<312x32xf32, #tpu.memory_space<vmem>>, vector<32x32xf32>
    %c200 = arith.constant 200 : index
    %c0_85 = arith.constant 0 : index
    %429 = vector.load %arg2[%c200, %c0_85] : memref<312x32xf32, #tpu.memory_space<vmem>>, vector<64x32xf32>
    %c264 = arith.constant 264 : index
    %c0_86 = arith.constant 0 : index
    %430 = vector.load %arg2[%c264, %c0_86] : memref<312x32xf32, #tpu.memory_space<vmem>>, vector<8x32xf32>
    %431 = vector.extract_strided_slice %430 {offsets = [0, 0], sizes = [1, 32], strides = [1, 1]} : vector<8x32xf32> to vector<1x32xf32>
    %432 = vector.extract_strided_slice %430 {offsets = [1, 0], sizes = [1, 32], strides = [1, 1]} : vector<8x32xf32> to vector<1x32xf32>
    %cst_87 = arith.constant dense<0.000000e+00> : vector<8x32xf32>
    %433 = tpu.matmul %426, %427, %cst_87 {dimension_numbers = #tpu.dot_dimension_numbers<[1], [0], [0], [1], [0, 0, 1, 1], [], []>} : vector<8x32xf32>, vector<32x32xf32>, vector<8x32xf32> -> vector<8x32xf32>
    %434 = vector.broadcast %431 : vector<1x32xf32> to vector<8x32xf32>
    %435 = arith.addf %433, %434 : vector<8x32xf32>
    %cst_88 = arith.constant dense<0xFF800000> : vector<8xf32>
    %436 = vector.multi_reduction <maximumf>, %435, %cst_88 [1] : vector<8x32xf32> to vector<8xf32>
    %437 = vector.shape_cast %436 : vector<8xf32> to vector<8x1xf32>
    %438 = vector.broadcast %437 : vector<8x1xf32> to vector<8x32xf32>
    %439 = arith.subf %435, %438 : vector<8x32xf32>
    %440 = math.exp %439 : vector<8x32xf32>
    %cst_89 = arith.constant dense<0.000000e+00> : vector<8xf32>
    %441 = vector.multi_reduction <add>, %440, %cst_89 [1] : vector<8x32xf32> to vector<8xf32>
    %442 = vector.shape_cast %441 : vector<8xf32> to vector<8x1xf32>
    %443 = vector.broadcast %442 : vector<8x1xf32> to vector<8x32xf32>
    %444 = arith.divf %440, %443 : vector<8x32xf32>
    %cst_90 = arith.constant dense<0.000000e+00> : vector<8x32xf32>
    %445 = tpu.matmul %444, %428, %cst_90 {dimension_numbers = #tpu.dot_dimension_numbers<[1], [0], [0], [1], [0, 0, 1, 1], [], []>} : vector<8x32xf32>, vector<32x32xf32>, vector<8x32xf32> -> vector<8x32xf32>
    %446 = tpu.concatenate %426, %445 in 1 : vector<8x32xf32>, vector<8x32xf32> -> vector<8x64xf32>
    %cst_91 = arith.constant dense<0.000000e+00> : vector<8x32xf32>
    %447 = tpu.matmul %446, %429, %cst_91 {dimension_numbers = #tpu.dot_dimension_numbers<[1], [0], [0], [1], [0, 0, 1, 1], [], []>} : vector<8x64xf32>, vector<64x32xf32>, vector<8x32xf32> -> vector<8x32xf32>
    %448 = vector.broadcast %432 : vector<1x32xf32> to vector<8x32xf32>
    %449 = arith.addf %447, %448 : vector<8x32xf32>
    %c272 = arith.constant 272 : index
    %c0_92 = arith.constant 0 : index
    %450 = vector.load %arg2[%c272, %c0_92] : memref<312x32xf32, #tpu.memory_space<vmem>>, vector<32x32xf32>
    %c304 = arith.constant 304 : index
    %c0_93 = arith.constant 0 : index
    %451 = vector.load %arg2[%c304, %c0_93] : memref<312x32xf32, #tpu.memory_space<vmem>>, vector<8x32xf32>
    %452 = vector.extract_strided_slice %451 {offsets = [0, 0], sizes = [1, 32], strides = [1, 1]} : vector<8x32xf32> to vector<1x32xf32>
    %cst_94 = arith.constant dense<0.000000e+00> : vector<8x32xf32>
    %453 = tpu.matmul %449, %450, %cst_94 {dimension_numbers = #tpu.dot_dimension_numbers<[1], [0], [0], [1], [0, 0, 1, 1], [], []>} : vector<8x32xf32>, vector<32x32xf32>, vector<8x32xf32> -> vector<8x32xf32>
    %454 = vector.broadcast %452 : vector<1x32xf32> to vector<8x32xf32>
    %455 = arith.addf %453, %454 : vector<8x32xf32>
    %c0_95 = arith.constant 0 : index
    %c0_96 = arith.constant 0 : index
    %456 = vector.load %arg3[%c0_95, %c0_96] : memref<8x32xf32, #tpu.memory_space<vmem>>, vector<8x32xf32>
    tpu.vector_store %arg3[%c0_95, %c0_96], %455 {strides = array<i32>} : memref<8x32xf32, #tpu.memory_space<vmem>>, vector<8x32xf32>,
    return
  }
}

</mosaic_0001>

<llo_original>
// kernel: grucat_forward.1
$region0: #{grucat_forward.1}
  #allocation0 [shape = 'u32[]', space=smem, size = 0x4, offset = 0x4, fixed_abs, tag = 'smem constant byte address 0x4 - core index']
  #allocation1 [shape = 'u32[72,128]{1,0:T(1,128)}', space=vmem, size = 0x9000, scoped, tag = 'internal scratch']
  #allocation2 [shape = 'f32[64,32]{1,0:T(8,128)}', space=vmem, size = 0x8000, scoped, tag = 'scratch operand']
  %s0 = inlined_call_operand.vmem [shape: s32[64,1], index: 0, kind: input, shape index: {}]
  %s1 = inlined_call_operand.vmem [shape: f32[136,96], index: 1, kind: input, shape index: {}]
  %s2 = inlined_call_operand.vmem [shape: f32[312,32], index: 2, kind: input, shape index: {}]
  %s3 = inlined_call_operand.vmem [shape: f32[8,32], index: 3, kind: output, shape index: {}]
  %s4 = sld [smem:[#allocation0]]
  $region22: #{grucat_forward.1} parent=0
    _
  %s6 = ssub.s32 1, %s4
  %s7 = scalar_select 0, %s6, %s4
  // Predicated region
  $region2: #{grucat_forward.1} parent=0 // pred_check
    _
  $region3: #{grucat_forward.1} parent=0 // pred_check_branch
    %9 = sbr.rel (0) target = $region5
  $region4: #{grucat_forward.1} parent=0 // pred_region
    _
  $region5: #{grucat_forward.1} parent=0 // pred_fallthru
    _
  // Predicated region
  $region6: #{grucat_forward.1} parent=0 // pred_check
    _
  $region7: #{grucat_forward.1} parent=0 // pred_check_branch
    %11 = sbr.rel (0) target = $region9
  $region8: #{grucat_forward.1} parent=0 // pred_region
    _
  $region9: #{grucat_forward.1} parent=0 // pred_fallthru
    _
  // Predicated region
  $region10: #{grucat_forward.1} parent=0 // pred_check
    _
  $region11: #{grucat_forward.1} parent=0 // pred_check_branch
    %13 = sbr.rel (0) target = $region13
  $region12: #{grucat_forward.1} parent=0 // pred_region
    _
  $region13: #{grucat_forward.1} parent=0 // pred_fallthru
    _
  %v14 = vld [vmem:[%s1] sm:$0xff]
  %v15 = vld [vmem:[%s1 + $0x8] sm:$0xff]
  %v16 = vld [vmem:[%s1 + $0x10] sm:$0xff]
  %v17 = vld [vmem:[%s1 + $0x18] sm:$0xff]
  %v18 = vld [vmem:[%s1 + $0x20] sm:$0xff]
  %v19 = vld [vmem:[%s1 + $0x28] sm:$0xff]
  %v20 = vld [vmem:[%s1 + $0x30] sm:$0xff]
  %v21 = vld [vmem:[%s1 + $0x38] sm:$0xff]
  %v22 = vld [vmem:[%s1 + $0x40] sm:$0xff]
  %v23 = vld [vmem:[%s1 + $0x48] sm:$0xff]
  %v24 = vld [vmem:[%s1 + $0x50] sm:$0xff]
  %v25 = vld [vmem:[%s1 + $0x58] sm:$0xff]
  %v26 = vld [vmem:[%s1 + $0x60] sm:$0xff]
  %v27 = vld [vmem:[%s1 + $0x68] sm:$0xff]
  %v28 = vld [vmem:[%s1 + $0x70] sm:$0xff]
  %v29 = vld [vmem:[%s1 + $0x78] sm:$0xff]
  %v30 = vld [vmem:[%s1 + $0x80] sm:$0xff]
  %v31 = vperm.slane %v30, 1
  %v32 = vperm.slane %v30, 3
  %v33 = vld [vmem:[%s0] sm:$0xff]
  %v34 = vld [vmem:[%s0 + $0x8] sm:$0xff]
  %v35 = vld [vmem:[%s0 + $0x10] sm:$0xff]
  %v36 = vld [vmem:[%s0 + $0x18] sm:$0xff]
  %v37 = vld [vmem:[%s0 + $0x20] sm:$0xff]
  %v38 = vld [vmem:[%s0 + $0x28] sm:$0xff]
  %v39 = vld [vmem:[%s0 + $0x30] sm:$0xff]
  %v40 = vld [vmem:[%s0 + $0x38] sm:$0xff]
  %v41 = vlaneseq
  %v42 = vand.u32 %v41, 127
  %43 = vset.pattern.permute.xlu0 0
  %44 = vperm.xlu0 %43, %v33
  %v45 = vpop.permute.xlu0 %44
  %46 = vset.pattern.permute.xlu0 0
  %47 = vperm.xlu0 %46, %v34
  %v48 = vpop.permute.xlu0 %47
  %49 = vset.pattern.permute.xlu0 0
  %50 = vperm.xlu0 %49, %v35
  %v51 = vpop.permute.xlu0 %50
  %52 = vset.pattern.permute.xlu0 0
  %53 = vperm.xlu0 %52, %v36
  %v54 = vpop.permute.xlu0 %53
  %55 = vset.pattern.permute.xlu0 0
  %56 = vperm.xlu0 %55, %v37
  %v57 = vpop.permute.xlu0 %56
  %58 = vset.pattern.permute.xlu0 0
  %59 = vperm.xlu0 %58, %v38
  %v60 = vpop.permute.xlu0 %59
  %61 = vset.pattern.permute.xlu0 0
  %62 = vperm.xlu0 %61, %v39
  %v63 = vpop.permute.xlu0 %62
  %64 = vset.pattern.permute.xlu0 0
  %65 = vperm.xlu0 %64, %v40
  %v66 = vpop.permute.xlu0 %65
  %vm67 = vcmp.eq.s32.totalorder %v42, %v45
  %vm68 = vcmp.eq.s32.totalorder %v42, %v48
  %vm69 = vcmp.eq.s32.totalorder %v42, %v51
  %vm70 = vcmp.eq.s32.totalorder %v42, %v54
  %vm71 = vcmp.eq.s32.totalorder %v42, %v57
  %vm72 = vcmp.eq.s32.totalorder %v42, %v60
  %vm73 = vcmp.eq.s32.totalorder %v42, %v63
  %vm74 = vcmp.eq.s32.totalorder %v42, %v66
  %v75 = vsel %vm67, 1, 0
  %v76 = vsel %vm68, 1, 0
  %v77 = vsel %vm69, 1, 0
  %v78 = vsel %vm70, 1, 0
  %v79 = vsel %vm71, 1, 0
  %v80 = vsel %vm72, 1, 0
  %v81 = vsel %vm73, 1, 0
  %v82 = vsel %vm74, 1, 0
  %v83 = vcvt.s32.f32 %v75
  %v84 = vcvt.s32.f32 %v76
  %v85 = vcvt.s32.f32 %v77
  %v86 = vcvt.s32.f32 %v78
  %v87 = vcvt.s32.f32 %v79
  %v88 = vcvt.s32.f32 %v80
  %v89 = vcvt.s32.f32 %v81
  %v90 = vcvt.s32.f32 %v82
  %v91 = vperm.slane %v30, 0
  %vm92 = vcmask 261120
  %v94 = vsel %vm92, %v83, 0
  %v97 = vsel %vm92, %v84, 0
  %v100 = vsel %vm92, %v85, 0
  %v103 = vsel %vm92, %v86, 0
  %v106 = vsel %vm92, %v87, 0
  %v109 = vsel %vm92, %v88, 0
  %v112 = vsel %vm92, %v89, 0
  %v115 = vsel %vm92, %v90, 0
  %117 = vmatpush.msra.mxu0 0.0
  %118 = vmatpush.msra.mxu0 0.0
  %119 = vmatpush.msra.mxu0 0.0
  %120 = vmatpush.msra.mxu0 0.0
  %121 = vmatpush.msra.mxu0 0.0
  %122 = vmatpush.msra.mxu0 0.0
  %123 = vmatpush.msra.mxu0 0.0
  %124 = vmatpush.msra.mxu0 0.0
  %125 = vmatpush.msra.mxu0 0.0
  %126 = vmatpush.msra.mxu0 0.0
  %127 = vmatpush.msra.mxu0 0.0
  %128 = vmatpush.msra.mxu0 0.0
  %129 = vmatpush.msra.mxu0 %v17
  %130 = vmatpush.msra.mxu0 %v16
  %131 = vmatpush.msra.mxu0 %v15
  %132 = vmatpush.msra.mxu0 %v14
  %133 = vmatmul.f32.gmra.mxu0 %v94
  %v134 = vpop.f32.mrf.mxu0
  %v135 = vadd.f32 %v91, %v134
  %136 = vmatmul.f32.gmra.mxu0 %v97
  %v137 = vpop.f32.mrf.mxu0
  %v138 = vadd.f32 %v91, %v137
  %139 = vmatmul.f32.gmra.mxu0 %v100
  %v140 = vpop.f32.mrf.mxu0
  %v141 = vadd.f32 %v91, %v140
  %142 = vmatmul.f32.gmra.mxu0 %v103
  %v143 = vpop.f32.mrf.mxu0
  %v144 = vadd.f32 %v91, %v143
  %145 = vmatmul.f32.gmra.mxu0 %v106
  %v146 = vpop.f32.mrf.mxu0
  %v147 = vadd.f32 %v91, %v146
  %148 = vmatmul.f32.gmra.mxu0 %v109
  %v149 = vpop.f32.mrf.mxu0
  %v150 = vadd.f32 %v91, %v149
  %151 = vmatmul.f32.gmra.mxu0 %v112
  %v152 = vpop.f32.mrf.mxu0
  %v153 = vadd.f32 %v91, %v152
  %154 = vmatmul.f32.gmra.mxu0 %v115
  %v155 = vpop.f32.mrf.mxu0
  %v156 = vadd.f32 %v91, %v155
  %157 = vdwg.mxu0
  %v159 = vsel %vm92, 0.0, 0
  %161 = vmatpush.msra.mxu0 0.0
  %162 = vmatpush.msra.mxu0 0.0
  %163 = vmatpush.msra.mxu0 0.0
  %164 = vmatpush.msra.mxu0 0.0
  %165 = vmatpush.msra.mxu0 0.0
  %166 = vmatpush.msra.mxu0 0.0
  %167 = vmatpush.msra.mxu0 0.0
  %168 = vmatpush.msra.mxu0 0.0
  %169 = vmatpush.msra.mxu0 0.0
  %170 = vmatpush.msra.mxu0 0.0
  %171 = vmatpush.msra.mxu0 0.0
  %172 = vmatpush.msra.mxu0 0.0
  %173 = vmatpush.msra.mxu0 %v21
  %174 = vmatpush.msra.mxu0 %v20
  %175 = vmatpush.msra.mxu0 %v19
  %176 = vmatpush.msra.mxu0 %v18
  %177 = vmatmul.f32.gmra.mxu0 %v159
  %v178 = vpop.f32.mrf.mxu0
  %v179 = vadd.f32 %v31, %v178
  %180 = vdwg.mxu0
  %v181 = vadd.f32 %v135, %v179
  %v182 = vxor.u32 %v181, 2147483648
  %v183 = vmul.f32 %v182, 1.442695
  %v184 = vpow.pop %v183
  %v185 = vadd.f32 %v184, 1.0
  %v186 = vrcp.pop %v185
  %v187 = vmul.f32 %v185, %v186
  %v188 = vsub.f32 1.0, %v187
  %v189 = vmul.f32 %v186, %v188
  %v190 = vadd.f32 %v186, %v189
  %vm191 = vweird.f32 %v185
  %vm192 = vweird.f32 %v186
  %vm193 = vmor %vm191, %vm192
  %v194 = vsel %vm193, %v186, %v190
  %v195 = vand.u32 2147483647, %v185
  %vm196 = vcmp.eq.f32.partialorder %v195, 8.507059e+37
  %v197 = vand.u32 %v185, 2147483648
  %v198 = vor.u32 1.1754944e-38, %v197
  %v199 = vsel %vm196, %v198, %v194
  %v200 = vmul.f32 1.0, %v199
  %202 = vrot.lane.b32.xlu0 %v179, 64
  %v203 = vpop.permute.xlu0 %202
  %v205 = vmul.f32 %v200, %v203
  %207 = vrot.lane.b32.xlu0 %v205, 64
  %v208 = vpop.permute.xlu0 %207
  %v210 = vadd.f32 %v135, %v208
  %v211 = vtanh.pop %v210
  %v212 = vsub.f32 1.0, %v200
  %214 = vrot.lane.b32.xlu0 %v211, 96
  %v215 = vpop.permute.xlu0 %214
  %v217 = vmul.f32 %v212, %v215
  %v218 = vmul.f32 %v200, 0.0
  %v219 = vadd.f32 %v217, %v218
  %221 = vrot.lane.b32.xlu0 %v219, 96
  %v222 = vpop.permute.xlu0 %221
  %224 = vst.msk [vmem:[#allocation2] sm:$0xff] %vm92, %v222
  %v225 = vsel %vm92, %v222, 0
  %227 = vmatpush.msra.mxu0 0.0
  %228 = vmatpush.msra.mxu0 0.0
  %229 = vmatpush.msra.mxu0 0.0
  %230 = vmatpush.msra.mxu0 0.0
  %231 = vmatpush.msra.mxu0 0.0
  %232 = vmatpush.msra.mxu0 0.0
  %233 = vmatpush.msra.mxu0 0.0
  %234 = vmatpush.msra.mxu0 0.0
  %235 = vmatpush.msra.mxu0 0.0
  %236 = vmatpush.msra.mxu0 0.0
  %237 = vmatpush.msra.mxu0 0.0
  %238 = vmatpush.msra.mxu0 0.0
  %239 = vmatpush.msra.mxu0 %v21
  %240 = vmatpush.msra.mxu0 %v20
  %241 = vmatpush.msra.mxu0 %v19
  %242 = vmatpush.msra.mxu0 %v18
  %243 = vmatmul.f32.gmra.mxu0 %v225
  %v244 = vpop.f32.mrf.mxu0
  %v245 = vadd.f32 %v31, %v244
  %246 = vdwg.mxu0
  %v247 = vadd.f32 %v138, %v245
  %v248 = vxor.u32 %v247, 2147483648
  %v249 = vmul.f32 %v248, 1.442695
  %v250 = vpow.pop %v249
  %v251 = vadd.f32 %v250, 1.0
  %v252 = vrcp.pop %v251
  %v253 = vmul.f32 %v251, %v252
  %v254 = vsub.f32 1.0, %v253
  %v255 = vmul.f32 %v252, %v254
  %v256 = vadd.f32 %v252, %v255
  %vm257 = vweird.f32 %v251
  %vm258 = vweird.f32 %v252
  %vm259 = vmor %vm257, %vm258
  %v260 = vsel %vm259, %v252, %v256
  %v261 = vand.u32 2147483647, %v251
  %vm262 = vcmp.eq.f32.partialorder %v261, 8.507059e+37
  %v263 = vand.u32 %v251, 2147483648
  %v264 = vor.u32 1.1754944e-38, %v263
  %v265 = vsel %vm262, %v264, %v260
  %v266 = vmul.f32 1.0, %v265
  %268 = vrot.lane.b32.xlu0 %v245, 64
  %v269 = vpop.permute.xlu0 %268
  %v271 = vmul.f32 %v266, %v269
  %273 = vrot.lane.b32.xlu0 %v271, 64
  %v274 = vpop.permute.xlu0 %273
  %v276 = vadd.f32 %v138, %v274
  %v277 = vtanh.pop %v276
  %v278 = vsub.f32 1.0, %v266
  %280 = vrot.lane.b32.xlu0 %v277, 96
  %v281 = vpop.permute.xlu0 %280
  %v283 = vmul.f32 %v278, %v281
  %v284 = vmul.f32 %v266, %v219
  %v285 = vadd.f32 %v283, %v284
  %287 = vrot.lane.b32.xlu0 %v285, 96
  %v288 = vpop.permute.xlu0 %287
  %290 = vst.msk [vmem:[#allocation2 + $0x8] sm:$0xff] %vm92, %v288
  %v291 = vsel %vm92, %v288, 0
  %293 = vmatpush.msra.mxu0 0.0
  %294 = vmatpush.msra.mxu0 0.0
  %295 = vmatpush.msra.mxu0 0.0
  %296 = vmatpush.msra.mxu0 0.0
  %297 = vmatpush.msra.mxu0 0.0
  %298 = vmatpush.msra.mxu0 0.0
  %299 = vmatpush.msra.mxu0 0.0
  %300 = vmatpush.msra.mxu0 0.0
  %301 = vmatpush.msra.mxu0 0.0
  %302 = vmatpush.msra.mxu0 0.0
  %303 = vmatpush.msra.mxu0 0.0
  %304 = vmatpush.msra.mxu0 0.0
  %305 = vmatpush.msra.mxu0 %v21
  %306 = vmatpush.msra.mxu0 %v20
  %307 = vmatpush.msra.mxu0 %v19
  %308 = vmatpush.msra.mxu0 %v18
  %309 = vmatmul.f32.gmra.mxu0 %v291
  %v310 = vpop.f32.mrf.mxu0
  %v311 = vadd.f32 %v31, %v310
  %312 = vdwg.mxu0
  %v313 = vadd.f32 %v141, %v311
  %v314 = vxor.u32 %v313, 2147483648
  %v315 = vmul.f32 %v314, 1.442695
  %v316 = vpow.pop %v315
  %v317 = vadd.f32 %v316, 1.0
  %v318 = vrcp.pop %v317
  %v319 = vmul.f32 %v317, %v318
  %v320 = vsub.f32 1.0, %v319
  %v321 = vmul.f32 %v318, %v320
  %v322 = vadd.f32 %v318, %v321
  %vm323 = vweird.f32 %v317
  %vm324 = vweird.f32 %v318
  %vm325 = vmor %vm323, %vm324
  %v326 = vsel %vm325, %v318, %v322
  %v327 = vand.u32 2147483647, %v317
  %vm328 = vcmp.eq.f32.partialorder %v327, 8.507059e+37
  %v329 = vand.u32 %v317, 2147483648
  %v330 = vor.u32 1.1754944e-38, %v329
  %v331 = vsel %vm328, %v330, %v326
  %v332 = vmul.f32 1.0, %v331
  %334 = vrot.lane.b32.xlu0 %v311, 64
  %v335 = vpop.permute.xlu0 %334
  %v337 = vmul.f32 %v332, %v335
  %339 = vrot.lane.b32.xlu0 %v337, 64
  %v340 = vpop.permute.xlu0 %339
  %v342 = vadd.f32 %v141, %v340
  %v343 = vtanh.pop %v342
  %v344 = vsub.f32 1.0, %v332
  %346 = vrot.lane.b32.xlu0 %v343, 96
  %v347 = vpop.permute.xlu0 %346
  %v349 = vmul.f32 %v344, %v347
  %v350 = vmul.f32 %v332, %v285
  %v351 = vadd.f32 %v349, %v350
  %353 = vrot.lane.b32.xlu0 %v351, 96
  %v354 = vpop.permute.xlu0 %353
  %356 = vst.msk [vmem:[#allocation2 + $0x10] sm:$0xff] %vm92, %v354
  %v357 = vsel %vm92, %v354, 0
  %359 = vmatpush.msra.mxu0 0.0
  %360 = vmatpush.msra.mxu0 0.0
  %361 = vmatpush.msra.mxu0 0.0
  %362 = vmatpush.msra.mxu0 0.0
  %363 = vmatpush.msra.mxu0 0.0
  %364 = vmatpush.msra.mxu0 0.0
  %365 = vmatpush.msra.mxu0 0.0
  %366 = vmatpush.msra.mxu0 0.0
  %367 = vmatpush.msra.mxu0 0.0
  %368 = vmatpush.msra.mxu0 0.0
  %369 = vmatpush.msra.mxu0 0.0
  %370 = vmatpush.msra.mxu0 0.0
  %371 = vmatpush.msra.mxu0 %v21
  %372 = vmatpush.msra.mxu0 %v20
  %373 = vmatpush.msra.mxu0 %v19
  %374 = vmatpush.msra.mxu0 %v18
  %375 = vmatmul.f32.gmra.mxu0 %v357
  %v376 = vpop.f32.mrf.mxu0
  %v377 = vadd.f32 %v31, %v376
  %378 = vdwg.mxu0
  %v379 = vadd.f32 %v144, %v377
  %v380 = vxor.u32 %v379, 2147483648
  %v381 = vmul.f32 %v380, 1.442695
  %v382 = vpow.pop %v381
  %v383 = vadd.f32 %v382, 1.0
  %v384 = vrcp.pop %v383
  %v385 = vmul.f32 %v383, %v384
  %v386 = vsub.f32 1.0, %v385
  %v387 = vmul.f32 %v384, %v386
  %v388 = vadd.f32 %v384, %v387
  %vm389 = vweird.f32 %v383
  %vm390 = vweird.f32 %v384
  %vm391 = vmor %vm389, %vm390
  %v392 = vsel %vm391, %v384, %v388
  %v393 = vand.u32 2147483647, %v383
  %vm394 = vcmp.eq.f32.partialorder %v393, 8.507059e+37
  %v395 = vand.u32 %v383, 2147483648
  %v396 = vor.u32 1.1754944e-38, %v395
  %v397 = vsel %vm394, %v396, %v392
  %v398 = vmul.f32 1.0, %v397
  %400 = vrot.lane.b32.xlu0 %v377, 64
  %v401 = vpop.permute.xlu0 %400
  %v403 = vmul.f32 %v398, %v401
  %405 = vrot.lane.b32.xlu0 %v403, 64
  %v406 = vpop.permute.xlu0 %405
  %v408 = vadd.f32 %v144, %v406
  %v409 = vtanh.pop %v408
  %v410 = vsub.f32 1.0, %v398
  %412 = vrot.lane.b32.xlu0 %v409, 96
  %v413 = vpop.permute.xlu0 %412
  %v415 = vmul.f32 %v410, %v413
  %v416 = vmul.f32 %v398, %v351
  %v417 = vadd.f32 %v415, %v416
  %419 = vrot.lane.b32.xlu0 %v417, 96
  %v420 = vpop.permute.xlu0 %419
  %422 = vst.msk [vmem:[#allocation2 + $0x18] sm:$0xff] %vm92, %v420
  %v423 = vsel %vm92, %v420, 0
  %425 = vmatpush.msra.mxu0 0.0
  %426 = vmatpush.msra.mxu0 0.0
  %427 = vmatpush.msra.mxu0 0.0
  %428 = vmatpush.msra.mxu0 0.0
  %429 = vmatpush.msra.mxu0 0.0
  %430 = vmatpush.msra.mxu0 0.0
  %431 = vmatpush.msra.mxu0 0.0
  %432 = vmatpush.msra.mxu0 0.0
  %433 = vmatpush.msra.mxu0 0.0
  %434 = vmatpush.msra.mxu0 0.0
  %435 = vmatpush.msra.mxu0 0.0
  %436 = vmatpush.msra.mxu0 0.0
  %437 = vmatpush.msra.mxu0 %v21
  %438 = vmatpush.msra.mxu0 %v20
  %439 = vmatpush.msra.mxu0 %v19
  %440 = vmatpush.msra.mxu0 %v18
  %441 = vmatmul.f32.gmra.mxu0 %v423
  %v442 = vpop.f32.mrf.mxu0
  %v443 = vadd.f32 %v31, %v442
  %444 = vdwg.mxu0
  %v445 = vadd.f32 %v147, %v443
  %v446 = vxor.u32 %v445, 2147483648
  %v447 = vmul.f32 %v446, 1.442695
  %v448 = vpow.pop %v447
  %v449 = vadd.f32 %v448, 1.0
  %v450 = vrcp.pop %v449
  %v451 = vmul.f32 %v449, %v450
  %v452 = vsub.f32 1.0, %v451
  %v453 = vmul.f32 %v450, %v452
  %v454 = vadd.f32 %v450, %v453
  %vm455 = vweird.f32 %v449
  %vm456 = vweird.f32 %v450
  %vm457 = vmor %vm455, %vm456
  %v458 = vsel %vm457, %v450, %v454
  %v459 = vand.u32 2147483647, %v449
  %vm460 = vcmp.eq.f32.partialorder %v459, 8.507059e+37
  %v461 = vand.u32 %v449, 2147483648
  %v462 = vor.u32 1.1754944e-38, %v461
  %v463 = vsel %vm460, %v462, %v458
  %v464 = vmul.f32 1.0, %v463
  %466 = vrot.lane.b32.xlu0 %v443, 64
  %v467 = vpop.permute.xlu0 %466
  %v469 = vmul.f32 %v464, %v467
  %471 = vrot.lane.b32.xlu0 %v469, 64
  %v472 = vpop.permute.xlu0 %471
  %v474 = vadd.f32 %v147, %v472
  %v475 = vtanh.pop %v474
  %v476 = vsub.f32 1.0, %v464
  %478 = vrot.lane.b32.xlu0 %v475, 96
  %v479 = vpop.permute.xlu0 %478
  %v481 = vmul.f32 %v476, %v479
  %v482 = vmul.f32 %v464, %v417
  %v483 = vadd.f32 %v481, %v482
  %485 = vrot.lane.b32.xlu0 %v483, 96
  %v486 = vpop.permute.xlu0 %485
  %488 = vst.msk [vmem:[#allocation2 + $0x20] sm:$0xff] %vm92, %v486
  %v489 = vsel %vm92, %v486, 0
  %491 = vmatpush.msra.mxu0 0.0
  %492 = vmatpush.msra.mxu0 0.0
  %493 = vmatpush.msra.mxu0 0.0
  %494 = vmatpush.msra.mxu0 0.0
  %495 = vmatpush.msra.mxu0 0.0
  %496 = vmatpush.msra.mxu0 0.0
  %497 = vmatpush.msra.mxu0 0.0
  %498 = vmatpush.msra.mxu0 0.0
  %499 = vmatpush.msra.mxu0 0.0
  %500 = vmatpush.msra.mxu0 0.0
  %501 = vmatpush.msra.mxu0 0.0
  %502 = vmatpush.msra.mxu0 0.0
  %503 = vmatpush.msra.mxu0 %v21
  %504 = vmatpush.msra.mxu0 %v20
  %505 = vmatpush.msra.mxu0 %v19
  %506 = vmatpush.msra.mxu0 %v18
  %507 = vmatmul.f32.gmra.mxu0 %v489
  %v508 = vpop.f32.mrf.mxu0
  %v509 = vadd.f32 %v31, %v508
  %510 = vdwg.mxu0
  %v511 = vadd.f32 %v150, %v509
  %v512 = vxor.u32 %v511, 2147483648
  %v513 = vmul.f32 %v512, 1.442695
  %v514 = vpow.pop %v513
  %v515 = vadd.f32 %v514, 1.0
  %v516 = vrcp.pop %v515
  %v517 = vmul.f32 %v515, %v516
  %v518 = vsub.f32 1.0, %v517
  %v519 = vmul.f32 %v516, %v518
  %v520 = vadd.f32 %v516, %v519
  %vm521 = vweird.f32 %v515
  %vm522 = vweird.f32 %v516
  %vm523 = vmor %vm521, %vm522
  %v524 = vsel %vm523, %v516, %v520
  %v525 = vand.u32 2147483647, %v515
  %vm526 = vcmp.eq.f32.partialorder %v525, 8.507059e+37
  %v527 = vand.u32 %v515, 2147483648
  %v528 = vor.u32 1.1754944e-38, %v527
  %v529 = vsel %vm526, %v528, %v524
  %v530 = vmul.f32 1.0, %v529
  %532 = vrot.lane.b32.xlu0 %v509, 64
  %v533 = vpop.permute.xlu0 %532
  %v535 = vmul.f32 %v530, %v533
  %537 = vrot.lane.b32.xlu0 %v535, 64
  %v538 = vpop.permute.xlu0 %537
  %v540 = vadd.f32 %v150, %v538
  %v541 = vtanh.pop %v540
  %v542 = vsub.f32 1.0, %v530
  %544 = vrot.lane.b32.xlu0 %v541, 96
  %v545 = vpop.permute.xlu0 %544
  %v547 = vmul.f32 %v542, %v545
  %v548 = vmul.f32 %v530, %v483
  %v549 = vadd.f32 %v547, %v548
  %551 = vrot.lane.b32.xlu0 %v549, 96
  %v552 = vpop.permute.xlu0 %551
  %554 = vst.msk [vmem:[#allocation2 + $0x28] sm:$0xff] %vm92, %v552
  %v555 = vsel %vm92, %v552, 0
  %557 = vmatpush.msra.mxu0 0.0
  %558 = vmatpush.msra.mxu0 0.0
  %559 = vmatpush.msra.mxu0 0.0
  %560 = vmatpush.msra.mxu0 0.0
  %561 = vmatpush.msra.mxu0 0.0
  %562 = vmatpush.msra.mxu0 0.0
  %563 = vmatpush.msra.mxu0 0.0
  %564 = vmatpush.msra.mxu0 0.0
  %565 = vmatpush.msra.mxu0 0.0
  %566 = vmatpush.msra.mxu0 0.0
  %567 = vmatpush.msra.mxu0 0.0
  %568 = vmatpush.msra.mxu0 0.0
  %569 = vmatpush.msra.mxu0 %v21
  %570 = vmatpush.msra.mxu0 %v20
  %571 = vmatpush.msra.mxu0 %v19
  %572 = vmatpush.msra.mxu0 %v18
  %573 = vmatmul.f32.gmra.mxu0 %v555
  %v574 = vpop.f32.mrf.mxu0
  %v575 = vadd.f32 %v31, %v574
  %576 = vdwg.mxu0
  %v577 = vadd.f32 %v153, %v575
  %v578 = vxor.u32 %v577, 2147483648
  %v579 = vmul.f32 %v578, 1.442695
  %v580 = vpow.pop %v579
  %v581 = vadd.f32 %v580, 1.0
  %v582 = vrcp.pop %v581
  %v583 = vmul.f32 %v581, %v582
  %v584 = vsub.f32 1.0, %v583
  %v585 = vmul.f32 %v582, %v584
  %v586 = vadd.f32 %v582, %v585
  %vm587 = vweird.f32 %v581
  %vm588 = vweird.f32 %v582
  %vm589 = vmor %vm587, %vm588
  %v590 = vsel %vm589, %v582, %v586
  %v591 = vand.u32 2147483647, %v581
  %vm592 = vcmp.eq.f32.partialorder %v591, 8.507059e+37
  %v593 = vand.u32 %v581, 2147483648
  %v594 = vor.u32 1.1754944e-38, %v593
  %v595 = vsel %vm592, %v594, %v590
  %v596 = vmul.f32 1.0, %v595
  %598 = vrot.lane.b32.xlu0 %v575, 64
  %v599 = vpop.permute.xlu0 %598
  %v601 = vmul.f32 %v596, %v599
  %603 = vrot.lane.b32.xlu0 %v601, 64
  %v604 = vpop.permute.xlu0 %603
  %v606 = vadd.f32 %v153, %v604
  %v607 = vtanh.pop %v606
  %v608 = vsub.f32 1.0, %v596
  %610 = vrot.lane.b32.xlu0 %v607, 96
  %v611 = vpop.permute.xlu0 %610
  %v613 = vmul.f32 %v608, %v611
  %v614 = vmul.f32 %v596, %v549
  %v615 = vadd.f32 %v613, %v614
  %617 = vrot.lane.b32.xlu0 %v615, 96
  %v618 = vpop.permute.xlu0 %617
  %620 = vst.msk [vmem:[#allocation2 + $0x30] sm:$0xff] %vm92, %v618
  %v621 = vsel %vm92, %v618, 0
  %623 = vmatpush.msra.mxu0 0.0
  %624 = vmatpush.msra.mxu0 0.0
  %625 = vmatpush.msra.mxu0 0.0
  %626 = vmatpush.msra.mxu0 0.0
  %627 = vmatpush.msra.mxu0 0.0
  %628 = vmatpush.msra.mxu0 0.0
  %629 = vmatpush.msra.mxu0 0.0
  %630 = vmatpush.msra.mxu0 0.0
  %631 = vmatpush.msra.mxu0 0.0
  %632 = vmatpush.msra.mxu0 0.0
  %633 = vmatpush.msra.mxu0 0.0
  %634 = vmatpush.msra.mxu0 0.0
  %635 = vmatpush.msra.mxu0 %v21
  %636 = vmatpush.msra.mxu0 %v20
  %637 = vmatpush.msra.mxu0 %v19
  %638 = vmatpush.msra.mxu0 %v18
  %639 = vmatmul.f32.gmra.mxu0 %v621
  %v640 = vpop.f32.mrf.mxu0
  %v641 = vadd.f32 %v31, %v640
  %642 = vdwg.mxu0
  %v643 = vadd.f32 %v156, %v641
  %v644 = vxor.u32 %v643, 2147483648
  %v645 = vmul.f32 %v644, 1.442695
  %v646 = vpow.pop %v645
  %v647 = vadd.f32 %v646, 1.0
  %v648 = vrcp.pop %v647
  %v649 = vmul.f32 %v647, %v648
  %v650 = vsub.f32 1.0, %v649
  %v651 = vmul.f32 %v648, %v650
  %v652 = vadd.f32 %v648, %v651
  %vm653 = vweird.f32 %v647
  %vm654 = vweird.f32 %v648
  %vm655 = vmor %vm653, %vm654
  %v656 = vsel %vm655, %v648, %v652
  %v657 = vand.u32 2147483647, %v647
  %vm658 = vcmp.eq.f32.partialorder %v657, 8.507059e+37
  %v659 = vand.u32 %v647, 2147483648
  %v660 = vor.u32 1.1754944e-38, %v659
  %v661 = vsel %vm658, %v660, %v656
  %v662 = vmul.f32 1.0, %v661
  %664 = vrot.lane.b32.xlu0 %v641, 64
  %v665 = vpop.permute.xlu0 %664
  %v667 = vmul.f32 %v662, %v665
  %669 = vrot.lane.b32.xlu0 %v667, 64
  %v670 = vpop.permute.xlu0 %669
  %v672 = vadd.f32 %v156, %v670
  %v673 = vtanh.pop %v672
  %v674 = vsub.f32 1.0, %v662
  %676 = vrot.lane.b32.xlu0 %v673, 96
  %v677 = vpop.permute.xlu0 %676
  %v679 = vmul.f32 %v674, %v677
  %v680 = vmul.f32 %v662, %v615
  %v681 = vadd.f32 %v679, %v680
  %683 = vrot.lane.b32.xlu0 %v681, 96
  %v684 = vpop.permute.xlu0 %683
  %686 = vst.msk [vmem:[#allocation2 + $0x38] sm:$0xff] %vm92, %v684
  %v687 = vld [vmem:[#allocation2] sm:$0xff]
  %v688 = vld [vmem:[#allocation2 + $0x8] sm:$0xff]
  %v689 = vld [vmem:[#allocation2 + $0x10] sm:$0xff]
  %v690 = vld [vmem:[#allocation2 + $0x18] sm:$0xff]
  %v691 = vld [vmem:[#allocation2 + $0x20] sm:$0xff]
  %v692 = vld [vmem:[#allocation2 + $0x28] sm:$0xff]
  %v693 = vld [vmem:[#allocation2 + $0x30] sm:$0xff]
  %v694 = vld [vmem:[#allocation2 + $0x38] sm:$0xff]
  %v695 = vperm.slane %v30, 2
  %v697 = vsel %vm92, %v687, 0
  %v700 = vsel %vm92, %v688, 0
  %v703 = vsel %vm92, %v689, 0
  %v706 = vsel %vm92, %v690, 0
  %v709 = vsel %vm92, %v691, 0
  %v712 = vsel %vm92, %v692, 0
  %v715 = vsel %vm92, %v693, 0
  %v718 = vsel %vm92, %v694, 0
  %720 = vmatpush.msra.mxu0 0.0
  %721 = vmatpush.msra.mxu0 0.0
  %722 = vmatpush.msra.mxu0 0.0
  %723 = vmatpush.msra.mxu0 0.0
  %724 = vmatpush.msra.mxu0 0.0
  %725 = vmatpush.msra.mxu0 0.0
  %726 = vmatpush.msra.mxu0 0.0
  %727 = vmatpush.msra.mxu0 0.0
  %728 = vmatpush.msra.mxu0 0.0
  %729 = vmatpush.msra.mxu0 0.0
  %730 = vmatpush.msra.mxu0 0.0
  %731 = vmatpush.msra.mxu0 0.0
  %732 = vmatpush.msra.mxu0 %v25
  %733 = vmatpush.msra.mxu0 %v24
  %734 = vmatpush.msra.mxu0 %v23
  %735 = vmatpush.msra.mxu0 %v22
  %736 = vmatmul.f32.gmra.mxu0 %v697
  %v737 = vpop.f32.mrf.mxu0
  %v738 = vadd.f32 %v695, %v737
  %739 = vmatmul.f32.gmra.mxu0 %v700
  %v740 = vpop.f32.mrf.mxu0
  %v741 = vadd.f32 %v695, %v740
  %742 = vmatmul.f32.gmra.mxu0 %v703
  %v743 = vpop.f32.mrf.mxu0
  %v744 = vadd.f32 %v695, %v743
  %745 = vmatmul.f32.gmra.mxu0 %v706
  %v746 = vpop.f32.mrf.mxu0
  %v747 = vadd.f32 %v695, %v746
  %748 = vmatmul.f32.gmra.mxu0 %v709
  %v749 = vpop.f32.mrf.mxu0
  %v750 = vadd.f32 %v695, %v749
  %751 = vmatmul.f32.gmra.mxu0 %v712
  %v752 = vpop.f32.mrf.mxu0
  %v753 = vadd.f32 %v695, %v752
  %754 = vmatmul.f32.gmra.mxu0 %v715
  %v755 = vpop.f32.mrf.mxu0
  %v756 = vadd.f32 %v695, %v755
  %757 = vmatmul.f32.gmra.mxu0 %v718
  %v758 = vpop.f32.mrf.mxu0
  %v759 = vadd.f32 %v695, %v758
  %760 = vdwg.mxu0
  %761 = vmatpush.msra.mxu0 0.0
  %762 = vmatpush.msra.mxu0 0.0
  %763 = vmatpush.msra.mxu0 0.0
  %764 = vmatpush.msra.mxu0 0.0
  %765 = vmatpush.msra.mxu0 0.0
  %766 = vmatpush.msra.mxu0 0.0
  %767 = vmatpush.msra.mxu0 0.0
  %768 = vmatpush.msra.mxu0 0.0
  %769 = vmatpush.msra.mxu0 0.0
  %770 = vmatpush.msra.mxu0 0.0
  %771 = vmatpush.msra.mxu0 0.0
  %772 = vmatpush.msra.mxu0 0.0
  %773 = vmatpush.msra.mxu0 %v29
  %774 = vmatpush.msra.mxu0 %v28
  %775 = vmatpush.msra.mxu0 %v27
  %776 = vmatpush.msra.mxu0 %v26
  %777 = vmatmul.f32.gmra.mxu0 %v159
  %v778 = vpop.f32.mrf.mxu0
  %v779 = vadd.f32 %v32, %v778
  %780 = vdwg.mxu0
  %v781 = vadd.f32 %v738, %v779
  %v782 = vxor.u32 %v781, 2147483648
  %v783 = vmul.f32 %v782, 1.442695
  %v784 = vpow.pop %v783
  %v785 = vadd.f32 %v784, 1.0
  %v786 = vrcp.pop %v785
  %v787 = vmul.f32 %v785, %v786
  %v788 = vsub.f32 1.0, %v787
  %v789 = vmul.f32 %v786, %v788
  %v790 = vadd.f32 %v786, %v789
  %vm791 = vweird.f32 %v785
  %vm792 = vweird.f32 %v786
  %vm793 = vmor %vm791, %vm792
  %v794 = vsel %vm793, %v786, %v790
  %v795 = vand.u32 2147483647, %v785
  %vm796 = vcmp.eq.f32.partialorder %v795, 8.507059e+37
  %v797 = vand.u32 %v785, 2147483648
  %v798 = vor.u32 1.1754944e-38, %v797
  %v799 = vsel %vm796, %v798, %v794
  %v800 = vmul.f32 1.0, %v799
  %802 = vrot.lane.b32.xlu0 %v779, 64
  %v803 = vpop.permute.xlu0 %802
  %v805 = vmul.f32 %v800, %v803
  %807 = vrot.lane.b32.xlu0 %v805, 64
  %v808 = vpop.permute.xlu0 %807
  %v810 = vadd.f32 %v738, %v808
  %v811 = vtanh.pop %v810
  %v812 = vsub.f32 1.0, %v800
  %814 = vrot.lane.b32.xlu0 %v811, 96
  %v815 = vpop.permute.xlu0 %814
  %v817 = vmul.f32 %v812, %v815
  %v818 = vmul.f32 %v800, 0.0
  %v819 = vadd.f32 %v817, %v818
  %821 = vrot.lane.b32.xlu0 %v819, 96
  %v822 = vpop.permute.xlu0 %821
  %v823 = vsel %vm92, %v822, 0
  %825 = vmatpush.msra.mxu0 0.0
  %826 = vmatpush.msra.mxu0 0.0
  %827 = vmatpush.msra.mxu0 0.0
  %828 = vmatpush.msra.mxu0 0.0
  %829 = vmatpush.msra.mxu0 0.0
  %830 = vmatpush.msra.mxu0 0.0
  %831 = vmatpush.msra.mxu0 0.0
  %832 = vmatpush.msra.mxu0 0.0
  %833 = vmatpush.msra.mxu0 0.0
  %834 = vmatpush.msra.mxu0 0.0
  %835 = vmatpush.msra.mxu0 0.0
  %836 = vmatpush.msra.mxu0 0.0
  %837 = vmatpush.msra.mxu0 %v29
  %838 = vmatpush.msra.mxu0 %v28
  %839 = vmatpush.msra.mxu0 %v27
  %840 = vmatpush.msra.mxu0 %v26
  %841 = vmatmul.f32.gmra.mxu0 %v823
  %v842 = vpop.f32.mrf.mxu0
  %v843 = vadd.f32 %v32, %v842
  %844 = vdwg.mxu0
  %v845 = vadd.f32 %v741, %v843
  %v846 = vxor.u32 %v845, 2147483648
  %v847 = vmul.f32 %v846, 1.442695
  %v848 = vpow.pop %v847
  %v849 = vadd.f32 %v848, 1.0
  %v850 = vrcp.pop %v849
  %v851 = vmul.f32 %v849, %v850
  %v852 = vsub.f32 1.0, %v851
  %v853 = vmul.f32 %v850, %v852
  %v854 = vadd.f32 %v850, %v853
  %vm855 = vweird.f32 %v849
  %vm856 = vweird.f32 %v850
  %vm857 = vmor %vm855, %vm856
  %v858 = vsel %vm857, %v850, %v854
  %v859 = vand.u32 2147483647, %v849
  %vm860 = vcmp.eq.f32.partialorder %v859, 8.507059e+37
  %v861 = vand.u32 %v849, 2147483648
  %v862 = vor.u32 1.1754944e-38, %v861
  %v863 = vsel %vm860, %v862, %v858
  %v864 = vmul.f32 1.0, %v863
  %866 = vrot.lane.b32.xlu0 %v843, 64
  %v867 = vpop.permute.xlu0 %866
  %v869 = vmul.f32 %v864, %v867
  %871 = vrot.lane.b32.xlu0 %v869, 64
  %v872 = vpop.permute.xlu0 %871
  %v874 = vadd.f32 %v741, %v872
  %v875 = vtanh.pop %v874
  %v876 = vsub.f32 1.0, %v864
  %878 = vrot.lane.b32.xlu0 %v875, 96
  %v879 = vpop.permute.xlu0 %878
  %v881 = vmul.f32 %v876, %v879
  %v882 = vmul.f32 %v864, %v819
  %v883 = vadd.f32 %v881, %v882
  %885 = vrot.lane.b32.xlu0 %v883, 96
  %v886 = vpop.permute.xlu0 %885
  %v887 = vsel %vm92, %v886, 0
  %889 = vmatpush.msra.mxu0 0.0
  %890 = vmatpush.msra.mxu0 0.0
  %891 = vmatpush.msra.mxu0 0.0
  %892 = vmatpush.msra.mxu0 0.0
  %893 = vmatpush.msra.mxu0 0.0
  %894 = vmatpush.msra.mxu0 0.0
  %895 = vmatpush.msra.mxu0 0.0
  %896 = vmatpush.msra.mxu0 0.0
  %897 = vmatpush.msra.mxu0 0.0
  %898 = vmatpush.msra.mxu0 0.0
  %899 = vmatpush.msra.mxu0 0.0
  %900 = vmatpush.msra.mxu0 0.0
  %901 = vmatpush.msra.mxu0 %v29
  %902 = vmatpush.msra.mxu0 %v28
  %903 = vmatpush.msra.mxu0 %v27
  %904 = vmatpush.msra.mxu0 %v26
  %905 = vmatmul.f32.gmra.mxu0 %v887
  %v906 = vpop.f32.mrf.mxu0
  %v907 = vadd.f32 %v32, %v906
  %908 = vdwg.mxu0
  %v909 = vadd.f32 %v744, %v907
  %v910 = vxor.u32 %v909, 2147483648
  %v911 = vmul.f32 %v910, 1.442695
  %v912 = vpow.pop %v911
  %v913 = vadd.f32 %v912, 1.0
  %v914 = vrcp.pop %v913
  %v915 = vmul.f32 %v913, %v914
  %v916 = vsub.f32 1.0, %v915
  %v917 = vmul.f32 %v914, %v916
  %v918 = vadd.f32 %v914, %v917
  %vm919 = vweird.f32 %v913
  %vm920 = vweird.f32 %v914
  %vm921 = vmor %vm919, %vm920
  %v922 = vsel %vm921, %v914, %v918
  %v923 = vand.u32 2147483647, %v913
  %vm924 = vcmp.eq.f32.partialorder %v923, 8.507059e+37
  %v925 = vand.u32 %v913, 2147483648
  %v926 = vor.u32 1.1754944e-38, %v925
  %v927 = vsel %vm924, %v926, %v922
  %v928 = vmul.f32 1.0, %v927
  %930 = vrot.lane.b32.xlu0 %v907, 64
  %v931 = vpop.permute.xlu0 %930
  %v933 = vmul.f32 %v928, %v931
  %935 = vrot.lane.b32.xlu0 %v933, 64
  %v936 = vpop.permute.xlu0 %935
  %v938 = vadd.f32 %v744, %v936
  %v939 = vtanh.pop %v938
  %v940 = vsub.f32 1.0, %v928
  %942 = vrot.lane.b32.xlu0 %v939, 96
  %v943 = vpop.permute.xlu0 %942
  %v945 = vmul.f32 %v940, %v943
  %v946 = vmul.f32 %v928, %v883
  %v947 = vadd.f32 %v945, %v946
  %949 = vrot.lane.b32.xlu0 %v947, 96
  %v950 = vpop.permute.xlu0 %949
  %v951 = vsel %vm92, %v950, 0
  %953 = vmatpush.msra.mxu0 0.0
  %954 = vmatpush.msra.mxu0 0.0
  %955 = vmatpush.msra.mxu0 0.0
  %956 = vmatpush.msra.mxu0 0.0
  %957 = vmatpush.msra.mxu0 0.0
  %958 = vmatpush.msra.mxu0 0.0
  %959 = vmatpush.msra.mxu0 0.0
  %960 = vmatpush.msra.mxu0 0.0
  %961 = vmatpush.msra.mxu0 0.0
  %962 = vmatpush.msra.mxu0 0.0
  %963 = vmatpush.msra.mxu0 0.0
  %964 = vmatpush.msra.mxu0 0.0
  %965 = vmatpush.msra.mxu0 %v29
  %966 = vmatpush.msra.mxu0 %v28
  %967 = vmatpush.msra.mxu0 %v27
  %968 = vmatpush.msra.mxu0 %v26
  %969 = vmatmul.f32.gmra.mxu0 %v951
  %v970 = vpop.f32.mrf.mxu0
  %v971 = vadd.f32 %v32, %v970
  %972 = vdwg.mxu0
  %v973 = vadd.f32 %v747, %v971
  %v974 = vxor.u32 %v973, 2147483648
  %v975 = vmul.f32 %v974, 1.442695
  %v976 = vpow.pop %v975
  %v977 = vadd.f32 %v976, 1.0
  %v978 = vrcp.pop %v977
  %v979 = vmul.f32 %v977, %v978
  %v980 = vsub.f32 1.0, %v979
  %v981 = vmul.f32 %v978, %v980
  %v982 = vadd.f32 %v978, %v981
  %vm983 = vweird.f32 %v977
  %vm984 = vweird.f32 %v978
  %vm985 = vmor %vm983, %vm984
  %v986 = vsel %vm985, %v978, %v982
  %v987 = vand.u32 2147483647, %v977
  %vm988 = vcmp.eq.f32.partialorder %v987, 8.507059e+37
  %v989 = vand.u32 %v977, 2147483648
  %v990 = vor.u32 1.1754944e-38, %v989
  %v991 = vsel %vm988, %v990, %v986
  %v992 = vmul.f32 1.0, %v991
  %994 = vrot.lane.b32.xlu0 %v971, 64
  %v995 = vpop.permute.xlu0 %994
  %v997 = vmul.f32 %v992, %v995
  %999 = vrot.lane.b32.xlu0 %v997, 64
  %v1000 = vpop.permute.xlu0 %999
  %v1002 = vadd.f32 %v747, %v1000
  %v1003 = vtanh.pop %v1002
  %v1004 = vsub.f32 1.0, %v992
  %1006 = vrot.lane.b32.xlu0 %v1003, 96
  %v1007 = vpop.permute.xlu0 %1006
  %v1009 = vmul.f32 %v1004, %v1007
  %v1010 = vmul.f32 %v992, %v947
  %v1011 = vadd.f32 %v1009, %v1010
  %1013 = vrot.lane.b32.xlu0 %v1011, 96
  %v1014 = vpop.permute.xlu0 %1013
  %v1015 = vsel %vm92, %v1014, 0
  %1017 = vmatpush.msra.mxu0 0.0
  %1018 = vmatpush.msra.mxu0 0.0
  %1019 = vmatpush.msra.mxu0 0.0
  %1020 = vmatpush.msra.mxu0 0.0
  %1021 = vmatpush.msra.mxu0 0.0
  %1022 = vmatpush.msra.mxu0 0.0
  %1023 = vmatpush.msra.mxu0 0.0
  %1024 = vmatpush.msra.mxu0 0.0
  %1025 = vmatpush.msra.mxu0 0.0
  %1026 = vmatpush.msra.mxu0 0.0
  %1027 = vmatpush.msra.mxu0 0.0
  %1028 = vmatpush.msra.mxu0 0.0
  %1029 = vmatpush.msra.mxu0 %v29
  %1030 = vmatpush.msra.mxu0 %v28
  %1031 = vmatpush.msra.mxu0 %v27
  %1032 = vmatpush.msra.mxu0 %v26
  %1033 = vmatmul.f32.gmra.mxu0 %v1015
  %v1034 = vpop.f32.mrf.mxu0
  %v1035 = vadd.f32 %v32, %v1034
  %1036 = vdwg.mxu0
  %v1037 = vadd.f32 %v750, %v1035
  %v1038 = vxor.u32 %v1037, 2147483648
  %v1039 = vmul.f32 %v1038, 1.442695
  %v1040 = vpow.pop %v1039
  %v1041 = vadd.f32 %v1040, 1.0
  %v1042 = vrcp.pop %v1041
  %v1043 = vmul.f32 %v1041, %v1042
  %v1044 = vsub.f32 1.0, %v1043
  %v1045 = vmul.f32 %v1042, %v1044
  %v1046 = vadd.f32 %v1042, %v1045
  %vm1047 = vweird.f32 %v1041
  %vm1048 = vweird.f32 %v1042
  %vm1049 = vmor %vm1047, %vm1048
  %v1050 = vsel %vm1049, %v1042, %v1046
  %v1051 = vand.u32 2147483647, %v1041
  %vm1052 = vcmp.eq.f32.partialorder %v1051, 8.507059e+37
  %v1053 = vand.u32 %v1041, 2147483648
  %v1054 = vor.u32 1.1754944e-38, %v1053
  %v1055 = vsel %vm1052, %v1054, %v1050
  %v1056 = vmul.f32 1.0, %v1055
  %1058 = vrot.lane.b32.xlu0 %v1035, 64
  %v1059 = vpop.permute.xlu0 %1058
  %v1061 = vmul.f32 %v1056, %v1059
  %1063 = vrot.lane.b32.xlu0 %v1061, 64
  %v1064 = vpop.permute.xlu0 %1063
  %v1066 = vadd.f32 %v750, %v1064
  %v1067 = vtanh.pop %v1066
  %v1068 = vsub.f32 1.0, %v1056
  %1070 = vrot.lane.b32.xlu0 %v1067, 96
  %v1071 = vpop.permute.xlu0 %1070
  %v1073 = vmul.f32 %v1068, %v1071
  %v1074 = vmul.f32 %v1056, %v1011
  %v1075 = vadd.f32 %v1073, %v1074
  %1077 = vrot.lane.b32.xlu0 %v1075, 96
  %v1078 = vpop.permute.xlu0 %1077
  %v1079 = vsel %vm92, %v1078, 0
  %1081 = vmatpush.msra.mxu0 0.0
  %1082 = vmatpush.msra.mxu0 0.0
  %1083 = vmatpush.msra.mxu0 0.0
  %1084 = vmatpush.msra.mxu0 0.0
  %1085 = vmatpush.msra.mxu0 0.0
  %1086 = vmatpush.msra.mxu0 0.0
  %1087 = vmatpush.msra.mxu0 0.0
  %1088 = vmatpush.msra.mxu0 0.0
  %1089 = vmatpush.msra.mxu0 0.0
  %1090 = vmatpush.msra.mxu0 0.0
  %1091 = vmatpush.msra.mxu0 0.0
  %1092 = vmatpush.msra.mxu0 0.0
  %1093 = vmatpush.msra.mxu0 %v29
  %1094 = vmatpush.msra.mxu0 %v28
  %1095 = vmatpush.msra.mxu0 %v27
  %1096 = vmatpush.msra.mxu0 %v26
  %1097 = vmatmul.f32.gmra.mxu0 %v1079
  %v1098 = vpop.f32.mrf.mxu0
  %v1099 = vadd.f32 %v32, %v1098
  %1100 = vdwg.mxu0
  %v1101 = vadd.f32 %v753, %v1099
  %v1102 = vxor.u32 %v1101, 2147483648
  %v1103 = vmul.f32 %v1102, 1.442695
  %v1104 = vpow.pop %v1103
  %v1105 = vadd.f32 %v1104, 1.0
  %v1106 = vrcp.pop %v1105
  %v1107 = vmul.f32 %v1105, %v1106
  %v1108 = vsub.f32 1.0, %v1107
  %v1109 = vmul.f32 %v1106, %v1108
  %v1110 = vadd.f32 %v1106, %v1109
  %vm1111 = vweird.f32 %v1105
  %vm1112 = vweird.f32 %v1106
  %vm1113 = vmor %vm1111, %vm1112
  %v1114 = vsel %vm1113, %v1106, %v1110
  %v1115 = vand.u32 2147483647, %v1105
  %vm1116 = vcmp.eq.f32.partialorder %v1115, 8.507059e+37
  %v1117 = vand.u32 %v1105, 2147483648
  %v1118 = vor.u32 1.1754944e-38, %v1117
  %v1119 = vsel %vm1116, %v1118, %v1114
  %v1120 = vmul.f32 1.0, %v1119
  %1122 = vrot.lane.b32.xlu0 %v1099, 64
  %v1123 = vpop.permute.xlu0 %1122
  %v1125 = vmul.f32 %v1120, %v1123
  %1127 = vrot.lane.b32.xlu0 %v1125, 64
  %v1128 = vpop.permute.xlu0 %1127
  %v1130 = vadd.f32 %v753, %v1128
  %v1131 = vtanh.pop %v1130
  %v1132 = vsub.f32 1.0, %v1120
  %1134 = vrot.lane.b32.xlu0 %v1131, 96
  %v1135 = vpop.permute.xlu0 %1134
  %v1137 = vmul.f32 %v1132, %v1135
  %v1138 = vmul.f32 %v1120, %v1075
  %v1139 = vadd.f32 %v1137, %v1138
  %1141 = vrot.lane.b32.xlu0 %v1139, 96
  %v1142 = vpop.permute.xlu0 %1141
  %v1143 = vsel %vm92, %v1142, 0
  %1145 = vmatpush.msra.mxu0 0.0
  %1146 = vmatpush.msra.mxu0 0.0
  %1147 = vmatpush.msra.mxu0 0.0
  %1148 = vmatpush.msra.mxu0 0.0
  %1149 = vmatpush.msra.mxu0 0.0
  %1150 = vmatpush.msra.mxu0 0.0
  %1151 = vmatpush.msra.mxu0 0.0
  %1152 = vmatpush.msra.mxu0 0.0
  %1153 = vmatpush.msra.mxu0 0.0
  %1154 = vmatpush.msra.mxu0 0.0
  %1155 = vmatpush.msra.mxu0 0.0
  %1156 = vmatpush.msra.mxu0 0.0
  %1157 = vmatpush.msra.mxu0 %v29
  %1158 = vmatpush.msra.mxu0 %v28
  %1159 = vmatpush.msra.mxu0 %v27
  %1160 = vmatpush.msra.mxu0 %v26
  %1161 = vmatmul.f32.gmra.mxu0 %v1143
  %v1162 = vpop.f32.mrf.mxu0
  %v1163 = vadd.f32 %v32, %v1162
  %1164 = vdwg.mxu0
  %v1165 = vadd.f32 %v756, %v1163
  %v1166 = vxor.u32 %v1165, 2147483648
  %v1167 = vmul.f32 %v1166, 1.442695
  %v1168 = vpow.pop %v1167
  %v1169 = vadd.f32 %v1168, 1.0
  %v1170 = vrcp.pop %v1169
  %v1171 = vmul.f32 %v1169, %v1170
  %v1172 = vsub.f32 1.0, %v1171
  %v1173 = vmul.f32 %v1170, %v1172
  %v1174 = vadd.f32 %v1170, %v1173
  %vm1175 = vweird.f32 %v1169
  %vm1176 = vweird.f32 %v1170
  %vm1177 = vmor %vm1175, %vm1176
  %v1178 = vsel %vm1177, %v1170, %v1174
  %v1179 = vand.u32 2147483647, %v1169
  %vm1180 = vcmp.eq.f32.partialorder %v1179, 8.507059e+37
  %v1181 = vand.u32 %v1169, 2147483648
  %v1182 = vor.u32 1.1754944e-38, %v1181
  %v1183 = vsel %vm1180, %v1182, %v1178
  %v1184 = vmul.f32 1.0, %v1183
  %1186 = vrot.lane.b32.xlu0 %v1163, 64
  %v1187 = vpop.permute.xlu0 %1186
  %v1189 = vmul.f32 %v1184, %v1187
  %1191 = vrot.lane.b32.xlu0 %v1189, 64
  %v1192 = vpop.permute.xlu0 %1191
  %v1194 = vadd.f32 %v756, %v1192
  %v1195 = vtanh.pop %v1194
  %v1196 = vsub.f32 1.0, %v1184
  %1198 = vrot.lane.b32.xlu0 %v1195, 96
  %v1199 = vpop.permute.xlu0 %1198
  %v1201 = vmul.f32 %v1196, %v1199
  %v1202 = vmul.f32 %v1184, %v1139
  %v1203 = vadd.f32 %v1201, %v1202
  %1205 = vrot.lane.b32.xlu0 %v1203, 96
  %v1206 = vpop.permute.xlu0 %1205
  %v1207 = vsel %vm92, %v1206, 0
  %1209 = vmatpush.msra.mxu0 0.0
  %1210 = vmatpush.msra.mxu0 0.0
  %1211 = vmatpush.msra.mxu0 0.0
  %1212 = vmatpush.msra.mxu0 0.0
  %1213 = vmatpush.msra.mxu0 0.0
  %1214 = vmatpush.msra.mxu0 0.0
  %1215 = vmatpush.msra.mxu0 0.0
  %1216 = vmatpush.msra.mxu0 0.0
  %1217 = vmatpush.msra.mxu0 0.0
  %1218 = vmatpush.msra.mxu0 0.0
  %1219 = vmatpush.msra.mxu0 0.0
  %1220 = vmatpush.msra.mxu0 0.0
  %1221 = vmatpush.msra.mxu0 %v29
  %1222 = vmatpush.msra.mxu0 %v28
  %1223 = vmatpush.msra.mxu0 %v27
  %1224 = vmatpush.msra.mxu0 %v26
  %1225 = vmatmul.f32.gmra.mxu0 %v1207
  %v1226 = vpop.f32.mrf.mxu0
  %v1227 = vadd.f32 %v32, %v1226
  %1228 = vdwg.mxu0
  %v1229 = vadd.f32 %v759, %v1227
  %v1230 = vxor.u32 %v1229, 2147483648
  %v1231 = vmul.f32 %v1230, 1.442695
  %v1232 = vpow.pop %v1231
  %v1233 = vadd.f32 %v1232, 1.0
  %v1234 = vrcp.pop %v1233
  %v1235 = vmul.f32 %v1233, %v1234
  %v1236 = vsub.f32 1.0, %v1235
  %v1237 = vmul.f32 %v1234, %v1236
  %v1238 = vadd.f32 %v1234, %v1237
  %vm1239 = vweird.f32 %v1233
  %vm1240 = vweird.f32 %v1234
  %vm1241 = vmor %vm1239, %vm1240
  %v1242 = vsel %vm1241, %v1234, %v1238
  %v1243 = vand.u32 2147483647, %v1233
  %vm1244 = vcmp.eq.f32.partialorder %v1243, 8.507059e+37
  %v1245 = vand.u32 %v1233, 2147483648
  %v1246 = vor.u32 1.1754944e-38, %v1245
  %v1247 = vsel %vm1244, %v1246, %v1242
  %v1248 = vmul.f32 1.0, %v1247
  %1250 = vrot.lane.b32.xlu0 %v1227, 64
  %v1251 = vpop.permute.xlu0 %1250
  %v1253 = vmul.f32 %v1248, %v1251
  %1255 = vrot.lane.b32.xlu0 %v1253, 64
  %v1256 = vpop.permute.xlu0 %1255
  %v1258 = vadd.f32 %v759, %v1256
  %v1259 = vtanh.pop %v1258
  %v1260 = vsub.f32 1.0, %v1248
  %1262 = vrot.lane.b32.xlu0 %v1259, 96
  %v1263 = vpop.permute.xlu0 %1262
  %v1265 = vmul.f32 %v1260, %v1263
  %v1266 = vmul.f32 %v1248, %v1203
  %v1267 = vadd.f32 %v1265, %v1266
  %v1268 = vld [vmem:[%s2] sm:$0xff]
  %v1269 = vld [vmem:[%s2 + $0x8] sm:$0xff]
  %v1270 = vld [vmem:[%s2 + $0x10] sm:$0xff]
  %v1271 = vld [vmem:[%s2 + $0x18] sm:$0xff]
  %v1272 = vld [vmem:[%s2 + $0x20] sm:$0xff]
  %v1273 = vld [vmem:[%s2 + $0x28] sm:$0xff]
  %v1274 = vld [vmem:[%s2 + $0x30] sm:$0xff]
  %v1275 = vld [vmem:[%s2 + $0x38] sm:$0xff]
  %v1276 = vld [vmem:[%s2 + $0x40] sm:$0xff]
  %v1277 = vld [vmem:[%s2 + $0x48] sm:$0xff]
  %v1278 = vld [vmem:[%s2 + $0x50] sm:$0xff]
  %v1279 = vld [vmem:[%s2 + $0x58] sm:$0xff]
  %v1280 = vld [vmem:[%s2 + $0x60] sm:$0xff]
  %v1281 = vld [vmem:[%s2 + $0x68] sm:$0xff]
  %v1282 = vld [vmem:[%s2 + $0x70] sm:$0xff]
  %v1283 = vld [vmem:[%s2 + $0x78] sm:$0xff]
  %v1284 = vld [vmem:[%s2 + $0x80] sm:$0xff]
  %v1285 = vperm.slane %v1284, 0
  %1287 = vrot.lane.b32.xlu0 %v1267, 96
  %v1288 = vpop.permute.xlu0 %1287
  %v1289 = vsel %vm92, %v1288, 0
  %1291 = vmatpush.msra.mxu0 0.0
  %1292 = vmatpush.msra.mxu0 0.0
  %1293 = vmatpush.msra.mxu0 0.0
  %1294 = vmatpush.msra.mxu0 0.0
  %1295 = vmatpush.msra.mxu0 0.0
  %1296 = vmatpush.msra.mxu0 0.0
  %1297 = vmatpush.msra.mxu0 0.0
  %1298 = vmatpush.msra.mxu0 0.0
  %1299 = vmatpush.msra.mxu0 0.0
  %1300 = vmatpush.msra.mxu0 0.0
  %1301 = vmatpush.msra.mxu0 0.0
  %1302 = vmatpush.msra.mxu0 0.0
  %1303 = vmatpush.msra.mxu0 %v1271
  %1304 = vmatpush.msra.mxu0 %v1270
  %1305 = vmatpush.msra.mxu0 %v1269
  %1306 = vmatpush.msra.mxu0 %v1268
  %1307 = vmatmul.f32.gmra.mxu0 %v1289
  %v1308 = vpop.f32.mrf.mxu0
  %v1309 = vadd.f32 %v1285, %v1308
  %1310 = vdwg.mxu0
  %v1311 = vsel %vm92, %v1309, -inf
  %1312 = vmax.xlane.f32.xlu0 %v1311
  %v1313 = vpop.xlane.xlu0 %1312
  %v1314 = vsub.f32 %v1309, %v1313
  %v1315 = vmul.f32 %v1314, 1.442695
  %v1316 = vpow.pop %v1315
  %v1317 = vsel %vm92, %v1316, 0.0
  %1318 = vadd.xlane.f32.xlu0 %v1317
  %v1319 = vpop.xlane.xlu0 %1318
  %v1320 = vrcp.pop %v1319
  %v1321 = vmul.f32 %v1319, %v1320
  %v1322 = vsub.f32 1.0, %v1321
  %v1323 = vmul.f32 %v1320, %v1322
  %v1324 = vadd.f32 %v1320, %v1323
  %vm1325 = vweird.f32 %v1319
  %vm1326 = vweird.f32 %v1320
  %vm1327 = vmor %vm1325, %vm1326
  %v1328 = vsel %vm1327, %v1320, %v1324
  %v1329 = vand.u32 2147483647, %v1319
  %vm1330 = vcmp.eq.f32.partialorder %v1329, 8.507059e+37
  %v1331 = vand.u32 %v1319, 2147483648
  %v1332 = vor.u32 1.1754944e-38, %v1331
  %v1333 = vsel %vm1330, %v1332, %v1328
  %v1334 = vmul.f32 %v1316, %v1333
  %v1336 = vsel %vm92, %v1334, 0
  %1338 = vmatpush.msra.mxu0 0.0
  %1339 = vmatpush.msra.mxu0 0.0
  %1340 = vmatpush.msra.mxu0 0.0
  %1341 = vmatpush.msra.mxu0 0.0
  %1342 = vmatpush.msra.mxu0 0.0
  %1343 = vmatpush.msra.mxu0 0.0
  %1344 = vmatpush.msra.mxu0 0.0
  %1345 = vmatpush.msra.mxu0 0.0
  %1346 = vmatpush.msra.mxu0 0.0
  %1347 = vmatpush.msra.mxu0 0.0
  %1348 = vmatpush.msra.mxu0 0.0
  %1349 = vmatpush.msra.mxu0 0.0
  %1350 = vmatpush.msra.mxu0 %v1275
  %1351 = vmatpush.msra.mxu0 %v1274
  %1352 = vmatpush.msra.mxu0 %v1273
  %1353 = vmatpush.msra.mxu0 %v1272
  %1354 = vmatmul.f32.gmra.mxu0 %v1336
  %v1355 = vpop.f32.mrf.mxu0
  %v1356 = vadd.f32 0.0, %v1355
  %1357 = vdwg.mxu0
  %1360 = vrot.lane.b32.xlu0 %v1356, 32
  %v1361 = vpop.permute.xlu0 %1360
  %v1363 = vsel %vm92, %v1288, %v1361
  %v1364 = vperm.slane %v1284, 1
  %vm1365 = vcmask 523264
  %v1367 = vsel %vm1365, %v1363, 0
  %1369 = vmatpush.msra.mxu0 0.0
  %1370 = vmatpush.msra.mxu0 0.0
  %1371 = vmatpush.msra.mxu0 0.0
  %1372 = vmatpush.msra.mxu0 0.0
  %1373 = vmatpush.msra.mxu0 0.0
  %1374 = vmatpush.msra.mxu0 0.0
  %1375 = vmatpush.msra.mxu0 0.0
  %1376 = vmatpush.msra.mxu0 0.0
  %1377 = vmatpush.msra.mxu0 %v1283
  %1378 = vmatpush.msra.mxu0 %v1282
  %1379 = vmatpush.msra.mxu0 %v1281
  %1380 = vmatpush.msra.mxu0 %v1280
  %1381 = vmatpush.msra.mxu0 %v1279
  %1382 = vmatpush.msra.mxu0 %v1278
  %1383 = vmatpush.msra.mxu0 %v1277
  %1384 = vmatpush.msra.mxu0 %v1276
  %1385 = vmatmul.f32.gmra.mxu0 %v1367
  %v1386 = vpop.f32.mrf.mxu0
  %v1387 = vadd.f32 %v1364, %v1386
  %1388 = vdwg.mxu0
  %v1389 = vld [vmem:[%s2 + $0x88] sm:$0xff]
  %v1390 = vld [vmem:[%s2 + $0x90] sm:$0xff]
  %v1391 = vld [vmem:[%s2 + $0x98] sm:$0xff]
  %v1392 = vld [vmem:[%s2 + $0xa0] sm:$0xff]
  %v1393 = vld [vmem:[%s2 + $0xa8] sm:$0xff]
  %v1394 = vld [vmem:[%s2 + $0xb0] sm:$0xff]
  %v1395 = vld [vmem:[%s2 + $0xb8] sm:$0xff]
  %v1396 = vld [vmem:[%s2 + $0xc0] sm:$0xff]
  %v1397 = vld [vmem:[%s2 + $0xc8] sm:$0xff]
  %v1398 = vld [vmem:[%s2 + $0xd0] sm:$0xff]
  %v1399 = vld [vmem:[%s2 + $0xd8] sm:$0xff]
  %v1400 = vld [vmem:[%s2 + $0xe0] sm:$0xff]
  %v1401 = vld [vmem:[%s2 + $0xe8] sm:$0xff]
  %v1402 = vld [vmem:[%s2 + $0xf0] sm:$0xff]
  %v1403 = vld [vmem:[%s2 + $0xf8] sm:$0xff]
  %v1404 = vld [vmem:[%s2 + $0x100] sm:$0xff]
  %v1405 = vld [vmem:[%s2 + $0x108] sm:$0xff]
  %v1406 = vperm.slane %v1405, 0
  %v1408 = vsel %vm92, %v1387, 0
  %1410 = vmatpush.msra.mxu0 0.0
  %1411 = vmatpush.msra.mxu0 0.0
  %1412 = vmatpush.msra.mxu0 0.0
  %1413 = vmatpush.msra.mxu0 0.0
  %1414 = vmatpush.msra.mxu0 0.0
  %1415 = vmatpush.msra.mxu0 0.0
  %1416 = vmatpush.msra.mxu0 0.0
  %1417 = vmatpush.msra.mxu0 0.0
  %1418 = vmatpush.msra.mxu0 0.0
  %1419 = vmatpush.msra.mxu0 0.0
  %1420 = vmatpush.msra.mxu0 0.0
  %1421 = vmatpush.msra.mxu0 0.0
  %1422 = vmatpush.msra.mxu0 %v1392
  %1423 = vmatpush.msra.mxu0 %v1391
  %1424 = vmatpush.msra.mxu0 %v1390
  %1425 = vmatpush.msra.mxu0 %v1389
  %1426 = vmatmul.f32.gmra.mxu0 %v1408
  %v1427 = vpop.f32.mrf.mxu0
  %v1428 = vadd.f32 %v1406, %v1427
  %1429 = vdwg.mxu0
  %v1430 = vsel %vm92, %v1428, -inf
  %1431 = vmax.xlane.f32.xlu0 %v1430
  %v1432 = vpop.xlane.xlu0 %1431
  %v1433 = vsub.f32 %v1428, %v1432
  %v1434 = vmul.f32 %v1433, 1.442695
  %v1435 = vpow.pop %v1434
  %v1436 = vsel %vm92, %v1435, 0.0
  %1437 = vadd.xlane.f32.xlu0 %v1436
  %v1438 = vpop.xlane.xlu0 %1437
  %v1439 = vrcp.pop %v1438
  %v1440 = vmul.f32 %v1438, %v1439
  %v1441 = vsub.f32 1.0, %v1440
  %v1442 = vmul.f32 %v1439, %v1441
  %v1443 = vadd.f32 %v1439, %v1442
  %vm1444 = vweird.f32 %v1438
  %vm1445 = vweird.f32 %v1439
  %vm1446 = vmor %vm1444, %vm1445
  %v1447 = vsel %vm1446, %v1439, %v1443
  %v1448 = vand.u32 2147483647, %v1438
  %vm1449 = vcmp.eq.f32.partialorder %v1448, 8.507059e+37
  %v1450 = vand.u32 %v1438, 2147483648
  %v1451 = vor.u32 1.1754944e-38, %v1450
  %v1452 = vsel %vm1449, %v1451, %v1447
  %v1453 = vmul.f32 %v1435, %v1452
  %v1455 = vsel %vm92, %v1453, 0
  %1457 = vmatpush.msra.mxu0 0.0
  %1458 = vmatpush.msra.mxu0 0.0
  %1459 = vmatpush.msra.mxu0 0.0
  %1460 = vmatpush.msra.mxu0 0.0
  %1461 = vmatpush.msra.mxu0 0.0
  %1462 = vmatpush.msra.mxu0 0.0
  %1463 = vmatpush.msra.mxu0 0.0
  %1464 = vmatpush.msra.mxu0 0.0
  %1465 = vmatpush.msra.mxu0 0.0
  %1466 = vmatpush.msra.mxu0 0.0
  %1467 = vmatpush.msra.mxu0 0.0
  %1468 = vmatpush.msra.mxu0 0.0
  %1469 = vmatpush.msra.mxu0 %v1396
  %1470 = vmatpush.msra.mxu0 %v1395
  %1471 = vmatpush.msra.mxu0 %v1394
  %1472 = vmatpush.msra.mxu0 %v1393
  %1473 = vmatmul.f32.gmra.mxu0 %v1455
  %v1474 = vpop.f32.mrf.mxu0
  %v1475 = vadd.f32 0.0, %v1474
  %1476 = vdwg.mxu0
  %1478 = vrot.lane.b32.xlu0 %v1475, 32
  %v1479 = vpop.permute.xlu0 %1478
  %v1481 = vsel %vm92, %v1387, %v1479
  %v1482 = vperm.slane %v1405, 1
  %v1484 = vsel %vm1365, %v1481, 0
  %1486 = vmatpush.msra.mxu0 0.0
  %1487 = vmatpush.msra.mxu0 0.0
  %1488 = vmatpush.msra.mxu0 0.0
  %1489 = vmatpush.msra.mxu0 0.0
  %1490 = vmatpush.msra.mxu0 0.0
  %1491 = vmatpush.msra.mxu0 0.0
  %1492 = vmatpush.msra.mxu0 0.0
  %1493 = vmatpush.msra.mxu0 0.0
  %1494 = vmatpush.msra.mxu0 %v1404
  %1495 = vmatpush.msra.mxu0 %v1403
  %1496 = vmatpush.msra.mxu0 %v1402
  %1497 = vmatpush.msra.mxu0 %v1401
  %1498 = vmatpush.msra.mxu0 %v1400
  %1499 = vmatpush.msra.mxu0 %v1399
  %1500 = vmatpush.msra.mxu0 %v1398
  %1501 = vmatpush.msra.mxu0 %v1397
  %1502 = vmatmul.f32.gmra.mxu0 %v1484
  %v1503 = vpop.f32.mrf.mxu0
  %v1504 = vadd.f32 %v1482, %v1503
  %1505 = vdwg.mxu0
  %v1506 = vld [vmem:[%s2 + $0x110] sm:$0xff]
  %v1507 = vld [vmem:[%s2 + $0x118] sm:$0xff]
  %v1508 = vld [vmem:[%s2 + $0x120] sm:$0xff]
  %v1509 = vld [vmem:[%s2 + $0x128] sm:$0xff]
  %v1510 = vld [vmem:[%s2 + $0x130] sm:$0xff]
  %v1511 = vperm.slane %v1510, 0
  %v1513 = vsel %vm92, %v1504, 0
  %1515 = vmatpush.msra.mxu0 0.0
  %1516 = vmatpush.msra.mxu0 0.0
  %1517 = vmatpush.msra.mxu0 0.0
  %1518 = vmatpush.msra.mxu0 0.0
  %1519 = vmatpush.msra.mxu0 0.0
  %1520 = vmatpush.msra.mxu0 0.0
  %1521 = vmatpush.msra.mxu0 0.0
  %1522 = vmatpush.msra.mxu0 0.0
  %1523 = vmatpush.msra.mxu0 0.0
  %1524 = vmatpush.msra.mxu0 0.0
  %1525 = vmatpush.msra.mxu0 0.0
  %1526 = vmatpush.msra.mxu0 0.0
  %1527 = vmatpush.msra.mxu0 %v1509
  %1528 = vmatpush.msra.mxu0 %v1508
  %1529 = vmatpush.msra.mxu0 %v1507
  %1530 = vmatpush.msra.mxu0 %v1506
  %1531 = vmatmul.f32.gmra.mxu0 %v1513
  %v1532 = vpop.f32.mrf.mxu0
  %v1533 = vadd.f32 %v1511, %v1532
  %1534 = vdwg.mxu0
  %1535 = vst.msk [vmem:[%s3] sm:$0xff] %vm92, %v1533
  // Predicated region
  $region14: #{grucat_forward.1} parent=0 // pred_check
    _
  $region15: #{grucat_forward.1} parent=0 // pred_check_branch
    %1537 = sbr.rel (0) target = $region17
  $region16: #{grucat_forward.1} parent=0 // pred_region
    _
  $region17: #{grucat_forward.1} parent=0 // pred_fallthru
    _
  // Predicated region
  $region18: #{grucat_forward.1} parent=0 // pred_check
    _
  $region19: #{grucat_forward.1} parent=0 // pred_check_branch
    %1539 = sbr.rel (0) target = $region21
  $region20: #{grucat_forward.1} parent=0 // pred_region
    _
  $region21: #{grucat_forward.1} parent=0 // pred_fallthru
    _

</llo_original>
